<compile_context>
chip_gen: v6e
topology: v6e:2x2x1
jax: 0.10.0
libtpu: 0.0.40
codegen_flags: <defaults>
</compile_context>

<pallas_src>
import jax
import jax.numpy as jnp
from jax.experimental import pallas as pl
from jax.experimental.pallas import tpu as pltpu

# ---- model hyperparameters (small, consistent with the module) ----
B = 2            # batch
N = 8            # sequence length (tokens)
C = 32           # embedding dim
NUM_HEADS = 4
HEAD_DIM = C // NUM_HEADS
ALL_HEAD_DIM = NUM_HEADS * HEAD_DIM
MLP_HIDDEN = int(C * 4.0)
SCALE = HEAD_DIM ** (-0.5)
EPS = 1e-5       # PyTorch LayerNorm default
NEG_INF = -1e30  # additive mask value (underflows to 0 after exp, no NaN/inf)


def _layernorm(x, gamma, beta):
    mu = jnp.mean(x, axis=-1, keepdims=True)
    var = jnp.mean((x - mu) ** 2, axis=-1, keepdims=True)
    return (x - mu) * jax.lax.rsqrt(var + EPS) * gamma + beta


def _erf(x):
    # Abramowitz & Stegun 7.1.26 rational approximation, |abs err| < 1.5e-7.
    p = 0.3275911
    a1, a2, a3, a4, a5 = (0.254829592, -0.284496736, 1.421413741,
                          -1.453152027, 1.061405429)
    ax = jnp.abs(x)
    t = 1.0 / (1.0 + p * ax)
    poly = ((((a5 * t + a4) * t + a3) * t + a2) * t + a1) * t
    y = 1.0 - poly * jnp.exp(-(ax * ax))
    return jnp.where(x >= 0, y, -y)


def _gelu_exact(x):
    # nn.GELU default = exact erf formulation.
    return 0.5 * x * (1.0 + _erf(x * 0.7071067811865476))


def block_kernel(x_ref, mask_ref,
                 g1_ref, b1_ref,
                 wqkv_ref, bqkv_ref,
                 wproj_ref, bproj_ref,
                 g2_ref, b2_ref,
                 w1_ref, bf1_ref,
                 w2_ref, bf2_ref,
                 o_ref):
    x = x_ref[...]                                            # (B*N, C) f32

    # ---- attention branch: x + proj(attn(norm1(x))) ----
    h = _layernorm(x, g1_ref[...], b1_ref[...])               # (B*N, C)
    # wqkv is pre-transposed (C, 3A) with the attention scale folded into its
    # q columns; bqkv likewise pre-scaled.  Single tall MXU matmul.
    qkv = jnp.dot(h, wqkv_ref[...],
                  preferred_element_type=jnp.float32) + bqkv_ref[...]   # (B*N, 3A)

    mask_bias = mask_ref[...]                                 # (B*N, B*N): 0 / -1e30
    wproj = wproj_ref[...]                                    # (A, C)

    attn_out = jnp.zeros((B * N, C), jnp.float32)
    for hh in range(NUM_HEADS):                               # tiny H -> unrolled
        lo = hh * HEAD_DIM
        hi = lo + HEAD_DIM
        q_h = qkv[:, lo:hi]                                   # (B*N, hd), pre-scaled
        k_h = qkv[:, ALL_HEAD_DIM + lo:ALL_HEAD_DIM + hi]     # (B*N, hd)
        v_h = qkv[:, 2 * ALL_HEAD_DIM + lo:2 * ALL_HEAD_DIM + hi]

        # All batches stacked: block-diagonal mask keeps images independent.
        s = jax.lax.dot_general(q_h, k_h, (((1,), (1,)), ((), ())),
                                preferred_element_type=jnp.float32)     # (B*N, B*N)
        s = s + mask_bias
        s = s - jnp.max(s, axis=-1, keepdims=True)
        e = jnp.exp(s)
        p = e / jnp.sum(e, axis=-1, keepdims=True)
        ctx = jnp.dot(p, v_h, preferred_element_type=jnp.float32)       # (B*N, hd)
        # Fold the output projection per head: accumulate ctx @ Wproj[head-slab].
        attn_out = attn_out + jnp.dot(ctx, wproj[lo:hi, :],
                                      preferred_element_type=jnp.float32)

    x = x + attn_out + bproj_ref[...]

    # ---- MLP branch: x + fc2(gelu(fc1(norm2(x)))) ----
    h2 = _layernorm(x, g2_ref[...], b2_ref[...])
    h2 = jnp.dot(h2, w1_ref[...],
                 preferred_element_type=jnp.float32) + bf1_ref[...]     # (B*N, hidden)
    h2 = _gelu_exact(h2)
    y = x + jnp.dot(h2, w2_ref[...],
                    preferred_element_type=jnp.float32) + bf2_ref[...]  # (B*N, C)

    o_ref[...] = y.astype(o_ref.dtype)


def _custom_block_impl(x, params):
    (g1, b1, wqkv, bqkv, wproj, bproj, g2, b2, w1, bf1, w2, bf2) = params

    # --- trace-time parameter prep (constant-folds under jit) ---
    scale_vec = jnp.concatenate([
        jnp.full((ALL_HEAD_DIM,), SCALE, jnp.float32),
        jnp.ones((2 * ALL_HEAD_DIM,), jnp.float32)])
    wqkv_t = wqkv.T * scale_vec[None, :]          # (C, 3A), scale folded into q
    bqkv_s = (bqkv * scale_vec).reshape(1, 3 * ALL_HEAD_DIM)
    wproj_t = wproj.T                             # (A, C)
    w1_t = w1.T                                   # (C, hidden)
    w2_t = w2.T                                   # (hidden, C)

    # Block-diagonal additive mask so all batches share one attention matmul.
    img = jnp.arange(B * N, dtype=jnp.int32) // N
    mask_bias = jnp.where(img[:, None] == img[None, :], 0.0, NEG_INF
                          ).astype(jnp.float32)   # (B*N, B*N)

    x_flat = x.reshape(B * N, C)
    args = (x_flat, mask_bias,
            g1.reshape(1, C), b1.reshape(1, C),
            wqkv_t, bqkv_s,
            wproj_t, bproj.reshape(1, C),
            g2.reshape(1, C), b2.reshape(1, C),
            w1_t, bf1.reshape(1, MLP_HIDDEN),
            w2_t, bf2.reshape(1, C))

    out = pl.pallas_call(
        block_kernel,
        out_shape=jax.ShapeDtypeStruct((B * N, C), x.dtype),
        in_specs=[pl.BlockSpec(memory_space=pltpu.MemorySpace.VMEM)] * len(args),
        out_specs=pl.BlockSpec(memory_space=pltpu.MemorySpace.VMEM),
    )(*args)
    return out.reshape(B, N, C)


custom_block = jax.jit(_custom_block_impl)


def reference_block(x, params):
    """Pure-JAX reference mirroring the PyTorch forward (f32-accurate matmuls)."""
    (g1, b1, wqkv, bqkv, wproj, bproj, g2, b2, w1, bf1, w2, bf2) = params
    hp = jax.lax.Precision.HIGHEST
    h = _layernorm(x, g1, b1)
    qkv = jnp.einsum('bnc,oc->bno', h, wqkv, precision=hp) + bqkv
    qkv = qkv.reshape(B, N, 3, NUM_HEADS, HEAD_DIM).transpose(2, 0, 3, 1, 4)
    q, k, v = qkv[0] * SCALE, qkv[1], qkv[2]                  # (B, H, N, hd)
    attn = jax.nn.softmax(
        jnp.einsum('bhnd,bhmd->bhnm', q, k, precision=hp), axis=-1)
    ctx = jnp.einsum('bhnm,bhmd->bhnd', attn, v, precision=hp)
    ctx = ctx.transpose(0, 2, 1, 3).reshape(B, N, ALL_HEAD_DIM)
    x = x + jnp.einsum('bna,ca->bnc', ctx, wproj, precision=hp) + bproj
    h2 = _layernorm(x, g2, b2)
    h2 = jax.nn.gelu(
        jnp.einsum('bnc,hc->bnh', h2, w1, precision=hp) + bf1, approximate=False)
    return x + jnp.einsum('bnh,ch->bnc', h2, w2, precision=hp) + bf2


def make_params(key):
    ks = jax.random.split(key, 10)
    g1 = jnp.ones((C,), jnp.float32)
    b1 = jnp.zeros((C,), jnp.float32)
    wqkv = 0.02 * jax.random.normal(ks[0], (3 * ALL_HEAD_DIM, C), jnp.float32)
    # qkv_bias = cat(q_bias, k_bias(=0 buffer), v_bias)
    q_bias = 0.02 * jax.random.normal(ks[1], (ALL_HEAD_DIM,), jnp.float32)
    k_bias = jnp.zeros((ALL_HEAD_DIM,), jnp.float32)
    v_bias = 0.02 * jax.random.normal(ks[2], (ALL_HEAD_DIM,), jnp.float32)
    bqkv = jnp.concatenate([q_bias, k_bias, v_bias])
    wproj = 0.02 * jax.random.normal(ks[3], (C, ALL_HEAD_DIM), jnp.float32)
    bproj = 0.02 * jax.random.normal(ks[4], (C,), jnp.float32)
    g2 = jnp.ones((C,), jnp.float32)
    b2 = jnp.zeros((C,), jnp.float32)
    w1 = 0.02 * jax.random.normal(ks[5], (MLP_HIDDEN, C), jnp.float32)
    bf1 = 0.02 * jax.random.normal(ks[6], (MLP_HIDDEN,), jnp.float32)
    w2 = 0.02 * jax.random.normal(ks[7], (C, MLP_HIDDEN), jnp.float32)
    bf2 = 0.02 * jax.random.normal(ks[8], (C,), jnp.float32)
    return (g1, b1, wqkv, bqkv, wproj, bproj, g2, b2, w1, bf1, w2, bf2)


if __name__ == "__main__":
    key = jax.random.PRNGKey(0)
    kx, kp = jax.random.split(key)
    x = jax.random.normal(kx, (B, N, C), jnp.float32)
    params = make_params(kp)

    out = jax.block_until_ready(custom_block(x, params))

    ref = reference_block(x, params)
    assert out.shape == (B, N, C)
    err = float(jnp.max(jnp.abs(out - ref)))
    # Exact-division softmax + high-accuracy erf + f32 MXU -> fp32-level parity.
    assert err < 1e-3, f"max abs err = {err}"
    print("KERNEL_OK")
</pallas_src>

<mosaic_0001>
module attributes {stable_mosaic.version = 11 : i64} {
  func.func @block_kernel(%arg0: memref<16x32xf32, #tpu.memory_space<vmem>>, %arg1: memref<16x16xf32, #tpu.memory_space<vmem>>, %arg2: memref<1x32xf32, #tpu.memory_space<vmem>>, %arg3: memref<1x32xf32, #tpu.memory_space<vmem>>, %arg4: memref<32x96xf32, #tpu.memory_space<vmem>>, %arg5: memref<1x96xf32, #tpu.memory_space<vmem>>, %arg6: memref<32x32xf32, #tpu.memory_space<vmem>>, %arg7: memref<1x32xf32, #tpu.memory_space<vmem>>, %arg8: memref<1x32xf32, #tpu.memory_space<vmem>>, %arg9: memref<1x32xf32, #tpu.memory_space<vmem>>, %arg10: memref<32x128xf32, #tpu.memory_space<vmem>>, %arg11: memref<1x128xf32, #tpu.memory_space<vmem>>, %arg12: memref<128x32xf32, #tpu.memory_space<vmem>>, %arg13: memref<1x32xf32, #tpu.memory_space<vmem>>, %arg14: memref<16x32xf32, #tpu.memory_space<vmem>>) attributes {dimension_semantics = [], scalar_prefetch = 0 : i64, scratch_operands = 0 : i64, tpu.core_type = #tpu.core_type<tc>} {
    %c0 = arith.constant 0 : index
    %c0_0 = arith.constant 0 : index
    %0 = vector.load %arg0[%c0, %c0_0] : memref<16x32xf32, #tpu.memory_space<vmem>>, vector<16x32xf32>
    %c0_1 = arith.constant 0 : index
    %c0_2 = arith.constant 0 : index
    %1 = vector.load %arg2[%c0_1, %c0_2] : memref<1x32xf32, #tpu.memory_space<vmem>>, vector<1x32xf32>
    %c0_3 = arith.constant 0 : index
    %c0_4 = arith.constant 0 : index
    %2 = vector.load %arg3[%c0_3, %c0_4] : memref<1x32xf32, #tpu.memory_space<vmem>>, vector<1x32xf32>
    %cst = arith.constant dense<0.000000e+00> : vector<16xf32>
    %3 = vector.multi_reduction <add>, %0, %cst [1] : vector<16x32xf32> to vector<16xf32>
    %4 = vector.shape_cast %3 : vector<16xf32> to vector<16x1xf32>
    %cst_5 = arith.constant 3.200000e+01 : f32
    %5 = vector.broadcast %cst_5 : f32 to vector<16x1xf32>
    %6 = arith.divf %4, %5 : vector<16x1xf32>
    %7 = vector.broadcast %6 : vector<16x1xf32> to vector<16x32xf32>
    %8 = arith.subf %0, %7 : vector<16x32xf32>
    %9 = arith.mulf %8, %8 : vector<16x32xf32>
    %cst_6 = arith.constant dense<0.000000e+00> : vector<16xf32>
    %10 = vector.multi_reduction <add>, %9, %cst_6 [1] : vector<16x32xf32> to vector<16xf32>
    %11 = vector.shape_cast %10 : vector<16xf32> to vector<16x1xf32>
    %cst_7 = arith.constant 3.200000e+01 : f32
    %12 = vector.broadcast %cst_7 : f32 to vector<16x1xf32>
    %13 = arith.divf %11, %12 : vector<16x1xf32>
    %14 = vector.broadcast %6 : vector<16x1xf32> to vector<16x32xf32>
    %15 = arith.subf %0, %14 : vector<16x32xf32>
    %cst_8 = arith.constant 9.99999974E-6 : f32
    %16 = vector.broadcast %cst_8 : f32 to vector<16x1xf32>
    %17 = arith.addf %13, %16 : vector<16x1xf32>
    %18 = math.rsqrt %17 : vector<16x1xf32>
    %19 = vector.broadcast %18 : vector<16x1xf32> to vector<16x32xf32>
    %20 = arith.mulf %15, %19 : vector<16x32xf32>
    %21 = vector.broadcast %1 : vector<1x32xf32> to vector<16x32xf32>
    %22 = arith.mulf %20, %21 : vector<16x32xf32>
    %23 = vector.broadcast %2 : vector<1x32xf32> to vector<16x32xf32>
    %24 = arith.addf %22, %23 : vector<16x32xf32>
    %c0_9 = arith.constant 0 : index
    %c0_10 = arith.constant 0 : index
    %25 = vector.load %arg4[%c0_9, %c0_10] : memref<32x96xf32, #tpu.memory_space<vmem>>, vector<32x96xf32>
    %cst_11 = arith.constant dense<0.000000e+00> : vector<16x96xf32>
    %26 = tpu.matmul %24, %25, %cst_11 {dimension_numbers = #tpu.dot_dimension_numbers<[1], [0], [0], [1], [0, 0, 1, 1], [], []>} : vector<16x32xf32>, vector<32x96xf32>, vector<16x96xf32> -> vector<16x96xf32>
    %c0_12 = arith.constant 0 : index
    %c0_13 = arith.constant 0 : index
    %27 = vector.load %arg5[%c0_12, %c0_13] : memref<1x96xf32, #tpu.memory_space<vmem>>, vector<1x96xf32>
    %28 = vector.broadcast %27 : vector<1x96xf32> to vector<16x96xf32>
    %29 = arith.addf %26, %28 : vector<16x96xf32>
    %c0_14 = arith.constant 0 : index
    %c0_15 = arith.constant 0 : index
    %30 = vector.load %arg1[%c0_14, %c0_15] : memref<16x16xf32, #tpu.memory_space<vmem>>, vector<16x16xf32>
    %c0_16 = arith.constant 0 : index
    %c0_17 = arith.constant 0 : index
    %31 = vector.load %arg6[%c0_16, %c0_17] : memref<32x32xf32, #tpu.memory_space<vmem>>, vector<32x32xf32>
    %cst_18 = arith.constant 0.000000e+00 : f32
    %32 = vector.broadcast %cst_18 : f32 to vector<16x32xf32>
    %33 = vector.extract_strided_slice %29 {offsets = [0, 0], sizes = [16, 8], strides = [1, 1]} : vector<16x96xf32> to vector<16x8xf32>
    %34 = vector.extract_strided_slice %29 {offsets = [0, 32], sizes = [16, 8], strides = [1, 1]} : vector<16x96xf32> to vector<16x8xf32>
    %35 = vector.extract_strided_slice %29 {offsets = [0, 64], sizes = [16, 8], strides = [1, 1]} : vector<16x96xf32> to vector<16x8xf32>
    %cst_19 = arith.constant dense<0.000000e+00> : vector<16x16xf32>
    %36 = tpu.matmul %33, %34, %cst_19 {dimension_numbers = #tpu.dot_dimension_numbers<[1], [1], [0], [0], [0, 0, 1, 0], [], []>} : vector<16x8xf32>, vector<16x8xf32>, vector<16x16xf32> -> vector<16x16xf32>
    %37 = arith.addf %36, %30 : vector<16x16xf32>
    %cst_20 = arith.constant dense<0xFF800000> : vector<16xf32>
    %38 = vector.multi_reduction <maximumf>, %37, %cst_20 [1] : vector<16x16xf32> to vector<16xf32>
    %39 = vector.shape_cast %38 : vector<16xf32> to vector<16x1xf32>
    %40 = vector.broadcast %39 : vector<16x1xf32> to vector<16x16xf32>
    %41 = arith.subf %37, %40 : vector<16x16xf32>
    %42 = math.exp %41 : vector<16x16xf32>
    %cst_21 = arith.constant dense<0.000000e+00> : vector<16xf32>
    %43 = vector.multi_reduction <add>, %42, %cst_21 [1] : vector<16x16xf32> to vector<16xf32>
    %44 = vector.shape_cast %43 : vector<16xf32> to vector<16x1xf32>
    %45 = vector.broadcast %44 : vector<16x1xf32> to vector<16x16xf32>
    %46 = arith.divf %42, %45 : vector<16x16xf32>
    %cst_22 = arith.constant dense<0.000000e+00> : vector<16x8xf32>
    %47 = tpu.matmul %46, %35, %cst_22 {dimension_numbers = #tpu.dot_dimension_numbers<[1], [0], [0], [1], [0, 0, 1, 1], [], []>} : vector<16x16xf32>, vector<16x8xf32>, vector<16x8xf32> -> vector<16x8xf32>
    %48 = vector.extract_strided_slice %31 {offsets = [0, 0], sizes = [8, 32], strides = [1, 1]} : vector<32x32xf32> to vector<8x32xf32>
    %cst_23 = arith.constant dense<0.000000e+00> : vector<16x32xf32>
    %49 = tpu.matmul %47, %48, %cst_23 {dimension_numbers = #tpu.dot_dimension_numbers<[1], [0], [0], [1], [0, 0, 1, 1], [], []>} : vector<16x8xf32>, vector<8x32xf32>, vector<16x32xf32> -> vector<16x32xf32>
    %50 = arith.addf %32, %49 : vector<16x32xf32>
    %51 = vector.extract_strided_slice %29 {offsets = [0, 8], sizes = [16, 8], strides = [1, 1]} : vector<16x96xf32> to vector<16x8xf32>
    %52 = vector.extract_strided_slice %29 {offsets = [0, 40], sizes = [16, 8], strides = [1, 1]} : vector<16x96xf32> to vector<16x8xf32>
    %53 = vector.extract_strided_slice %29 {offsets = [0, 72], sizes = [16, 8], strides = [1, 1]} : vector<16x96xf32> to vector<16x8xf32>
    %cst_24 = arith.constant dense<0.000000e+00> : vector<16x16xf32>
    %54 = tpu.matmul %51, %52, %cst_24 {dimension_numbers = #tpu.dot_dimension_numbers<[1], [1], [0], [0], [0, 0, 1, 0], [], []>} : vector<16x8xf32>, vector<16x8xf32>, vector<16x16xf32> -> vector<16x16xf32>
    %55 = arith.addf %54, %30 : vector<16x16xf32>
    %cst_25 = arith.constant dense<0xFF800000> : vector<16xf32>
    %56 = vector.multi_reduction <maximumf>, %55, %cst_25 [1] : vector<16x16xf32> to vector<16xf32>
    %57 = vector.shape_cast %56 : vector<16xf32> to vector<16x1xf32>
    %58 = vector.broadcast %57 : vector<16x1xf32> to vector<16x16xf32>
    %59 = arith.subf %55, %58 : vector<16x16xf32>
    %60 = math.exp %59 : vector<16x16xf32>
    %cst_26 = arith.constant dense<0.000000e+00> : vector<16xf32>
    %61 = vector.multi_reduction <add>, %60, %cst_26 [1] : vector<16x16xf32> to vector<16xf32>
    %62 = vector.shape_cast %61 : vector<16xf32> to vector<16x1xf32>
    %63 = vector.broadcast %62 : vector<16x1xf32> to vector<16x16xf32>
    %64 = arith.divf %60, %63 : vector<16x16xf32>
    %cst_27 = arith.constant dense<0.000000e+00> : vector<16x8xf32>
    %65 = tpu.matmul %64, %53, %cst_27 {dimension_numbers = #tpu.dot_dimension_numbers<[1], [0], [0], [1], [0, 0, 1, 1], [], []>} : vector<16x16xf32>, vector<16x8xf32>, vector<16x8xf32> -> vector<16x8xf32>
    %66 = vector.extract_strided_slice %31 {offsets = [8, 0], sizes = [8, 32], strides = [1, 1]} : vector<32x32xf32> to vector<8x32xf32>
    %cst_28 = arith.constant dense<0.000000e+00> : vector<16x32xf32>
    %67 = tpu.matmul %65, %66, %cst_28 {dimension_numbers = #tpu.dot_dimension_numbers<[1], [0], [0], [1], [0, 0, 1, 1], [], []>} : vector<16x8xf32>, vector<8x32xf32>, vector<16x32xf32> -> vector<16x32xf32>
    %68 = arith.addf %50, %67 : vector<16x32xf32>
    %69 = vector.extract_strided_slice %29 {offsets = [0, 16], sizes = [16, 8], strides = [1, 1]} : vector<16x96xf32> to vector<16x8xf32>
    %70 = vector.extract_strided_slice %29 {offsets = [0, 48], sizes = [16, 8], strides = [1, 1]} : vector<16x96xf32> to vector<16x8xf32>
    %71 = vector.extract_strided_slice %29 {offsets = [0, 80], sizes = [16, 8], strides = [1, 1]} : vector<16x96xf32> to vector<16x8xf32>
    %cst_29 = arith.constant dense<0.000000e+00> : vector<16x16xf32>
    %72 = tpu.matmul %69, %70, %cst_29 {dimension_numbers = #tpu.dot_dimension_numbers<[1], [1], [0], [0], [0, 0, 1, 0], [], []>} : vector<16x8xf32>, vector<16x8xf32>, vector<16x16xf32> -> vector<16x16xf32>
    %73 = arith.addf %72, %30 : vector<16x16xf32>
    %cst_30 = arith.constant dense<0xFF800000> : vector<16xf32>
    %74 = vector.multi_reduction <maximumf>, %73, %cst_30 [1] : vector<16x16xf32> to vector<16xf32>
    %75 = vector.shape_cast %74 : vector<16xf32> to vector<16x1xf32>
    %76 = vector.broadcast %75 : vector<16x1xf32> to vector<16x16xf32>
    %77 = arith.subf %73, %76 : vector<16x16xf32>
    %78 = math.exp %77 : vector<16x16xf32>
    %cst_31 = arith.constant dense<0.000000e+00> : vector<16xf32>
    %79 = vector.multi_reduction <add>, %78, %cst_31 [1] : vector<16x16xf32> to vector<16xf32>
    %80 = vector.shape_cast %79 : vector<16xf32> to vector<16x1xf32>
    %81 = vector.broadcast %80 : vector<16x1xf32> to vector<16x16xf32>
    %82 = arith.divf %78, %81 : vector<16x16xf32>
    %cst_32 = arith.constant dense<0.000000e+00> : vector<16x8xf32>
    %83 = tpu.matmul %82, %71, %cst_32 {dimension_numbers = #tpu.dot_dimension_numbers<[1], [0], [0], [1], [0, 0, 1, 1], [], []>} : vector<16x16xf32>, vector<16x8xf32>, vector<16x8xf32> -> vector<16x8xf32>
    %84 = vector.extract_strided_slice %31 {offsets = [16, 0], sizes = [8, 32], strides = [1, 1]} : vector<32x32xf32> to vector<8x32xf32>
    %cst_33 = arith.constant dense<0.000000e+00> : vector<16x32xf32>
    %85 = tpu.matmul %83, %84, %cst_33 {dimension_numbers = #tpu.dot_dimension_numbers<[1], [0], [0], [1], [0, 0, 1, 1], [], []>} : vector<16x8xf32>, vector<8x32xf32>, vector<16x32xf32> -> vector<16x32xf32>
    %86 = arith.addf %68, %85 : vector<16x32xf32>
    %87 = vector.extract_strided_slice %29 {offsets = [0, 24], sizes = [16, 8], strides = [1, 1]} : vector<16x96xf32> to vector<16x8xf32>
    %88 = vector.extract_strided_slice %29 {offsets = [0, 56], sizes = [16, 8], strides = [1, 1]} : vector<16x96xf32> to vector<16x8xf32>
    %89 = vector.extract_strided_slice %29 {offsets = [0, 88], sizes = [16, 8], strides = [1, 1]} : vector<16x96xf32> to vector<16x8xf32>
    %cst_34 = arith.constant dense<0.000000e+00> : vector<16x16xf32>
    %90 = tpu.matmul %87, %88, %cst_34 {dimension_numbers = #tpu.dot_dimension_numbers<[1], [1], [0], [0], [0, 0, 1, 0], [], []>} : vector<16x8xf32>, vector<16x8xf32>, vector<16x16xf32> -> vector<16x16xf32>
    %91 = arith.addf %90, %30 : vector<16x16xf32>
    %cst_35 = arith.constant dense<0xFF800000> : vector<16xf32>
    %92 = vector.multi_reduction <maximumf>, %91, %cst_35 [1] : vector<16x16xf32> to vector<16xf32>
    %93 = vector.shape_cast %92 : vector<16xf32> to vector<16x1xf32>
    %94 = vector.broadcast %93 : vector<16x1xf32> to vector<16x16xf32>
    %95 = arith.subf %91, %94 : vector<16x16xf32>
    %96 = math.exp %95 : vector<16x16xf32>
    %cst_36 = arith.constant dense<0.000000e+00> : vector<16xf32>
    %97 = vector.multi_reduction <add>, %96, %cst_36 [1] : vector<16x16xf32> to vector<16xf32>
    %98 = vector.shape_cast %97 : vector<16xf32> to vector<16x1xf32>
    %99 = vector.broadcast %98 : vector<16x1xf32> to vector<16x16xf32>
    %100 = arith.divf %96, %99 : vector<16x16xf32>
    %cst_37 = arith.constant dense<0.000000e+00> : vector<16x8xf32>
    %101 = tpu.matmul %100, %89, %cst_37 {dimension_numbers = #tpu.dot_dimension_numbers<[1], [0], [0], [1], [0, 0, 1, 1], [], []>} : vector<16x16xf32>, vector<16x8xf32>, vector<16x8xf32> -> vector<16x8xf32>
    %102 = vector.extract_strided_slice %31 {offsets = [24, 0], sizes = [8, 32], strides = [1, 1]} : vector<32x32xf32> to vector<8x32xf32>
    %cst_38 = arith.constant dense<0.000000e+00> : vector<16x32xf32>
    %103 = tpu.matmul %101, %102, %cst_38 {dimension_numbers = #tpu.dot_dimension_numbers<[1], [0], [0], [1], [0, 0, 1, 1], [], []>} : vector<16x8xf32>, vector<8x32xf32>, vector<16x32xf32> -> vector<16x32xf32>
    %104 = arith.addf %86, %103 : vector<16x32xf32>
    %105 = arith.addf %0, %104 : vector<16x32xf32>
    %c0_39 = arith.constant 0 : index
    %c0_40 = arith.constant 0 : index
    %106 = vector.load %arg7[%c0_39, %c0_40] : memref<1x32xf32, #tpu.memory_space<vmem>>, vector<1x32xf32>
    %107 = vector.broadcast %106 : vector<1x32xf32> to vector<16x32xf32>
    %108 = arith.addf %105, %107 : vector<16x32xf32>
    %c0_41 = arith.constant 0 : index
    %c0_42 = arith.constant 0 : index
    %109 = vector.load %arg8[%c0_41, %c0_42] : memref<1x32xf32, #tpu.memory_space<vmem>>, vector<1x32xf32>
    %c0_43 = arith.constant 0 : index
    %c0_44 = arith.constant 0 : index
    %110 = vector.load %arg9[%c0_43, %c0_44] : memref<1x32xf32, #tpu.memory_space<vmem>>, vector<1x32xf32>
    %cst_45 = arith.constant dense<0.000000e+00> : vector<16xf32>
    %111 = vector.multi_reduction <add>, %108, %cst_45 [1] : vector<16x32xf32> to vector<16xf32>
    %112 = vector.shape_cast %111 : vector<16xf32> to vector<16x1xf32>
    %cst_46 = arith.constant 3.200000e+01 : f32
    %113 = vector.broadcast %cst_46 : f32 to vector<16x1xf32>
    %114 = arith.divf %112, %113 : vector<16x1xf32>
    %115 = vector.broadcast %114 : vector<16x1xf32> to vector<16x32xf32>
    %116 = arith.subf %108, %115 : vector<16x32xf32>
    %117 = arith.mulf %116, %116 : vector<16x32xf32>
    %cst_47 = arith.constant dense<0.000000e+00> : vector<16xf32>
    %118 = vector.multi_reduction <add>, %117, %cst_47 [1] : vector<16x32xf32> to vector<16xf32>
    %119 = vector.shape_cast %118 : vector<16xf32> to vector<16x1xf32>
    %cst_48 = arith.constant 3.200000e+01 : f32
    %120 = vector.broadcast %cst_48 : f32 to vector<16x1xf32>
    %121 = arith.divf %119, %120 : vector<16x1xf32>
    %122 = vector.broadcast %114 : vector<16x1xf32> to vector<16x32xf32>
    %123 = arith.subf %108, %122 : vector<16x32xf32>
    %cst_49 = arith.constant 9.99999974E-6 : f32
    %124 = vector.broadcast %cst_49 : f32 to vector<16x1xf32>
    %125 = arith.addf %121, %124 : vector<16x1xf32>
    %126 = math.rsqrt %125 : vector<16x1xf32>
    %127 = vector.broadcast %126 : vector<16x1xf32> to vector<16x32xf32>
    %128 = arith.mulf %123, %127 : vector<16x32xf32>
    %129 = vector.broadcast %109 : vector<1x32xf32> to vector<16x32xf32>
    %130 = arith.mulf %128, %129 : vector<16x32xf32>
    %131 = vector.broadcast %110 : vector<1x32xf32> to vector<16x32xf32>
    %132 = arith.addf %130, %131 : vector<16x32xf32>
    %c0_50 = arith.constant 0 : index
    %c0_51 = arith.constant 0 : index
    %133 = vector.load %arg10[%c0_50, %c0_51] : memref<32x128xf32, #tpu.memory_space<vmem>>, vector<32x128xf32>
    %cst_52 = arith.constant dense<0.000000e+00> : vector<16x128xf32>
    %134 = tpu.matmul %132, %133, %cst_52 {dimension_numbers = #tpu.dot_dimension_numbers<[1], [0], [0], [1], [0, 0, 1, 1], [], []>} : vector<16x32xf32>, vector<32x128xf32>, vector<16x128xf32> -> vector<16x128xf32>
    %c0_53 = arith.constant 0 : index
    %c0_54 = arith.constant 0 : index
    %135 = vector.load %arg11[%c0_53, %c0_54] : memref<1x128xf32, #tpu.memory_space<vmem>>, vector<1x128xf32>
    %136 = vector.broadcast %135 : vector<1x128xf32> to vector<16x128xf32>
    %137 = arith.addf %134, %136 : vector<16x128xf32>
    %cst_55 = arith.constant 5.000000e-01 : f32
    %138 = vector.broadcast %cst_55 : f32 to vector<16x128xf32>
    %139 = arith.mulf %138, %137 : vector<16x128xf32>
    %cst_56 = arith.constant 0.707106769 : f32
    %140 = vector.broadcast %cst_56 : f32 to vector<16x128xf32>
    %141 = arith.mulf %137, %140 : vector<16x128xf32>
    %142 = math.absf %141 : vector<16x128xf32>
    %cst_57 = arith.constant 0.327591091 : f32
    %143 = vector.broadcast %cst_57 : f32 to vector<16x128xf32>
    %144 = arith.mulf %143, %142 : vector<16x128xf32>
    %cst_58 = arith.constant 1.000000e+00 : f32
    %145 = vector.broadcast %cst_58 : f32 to vector<16x128xf32>
    %146 = arith.addf %145, %144 : vector<16x128xf32>
    %cst_59 = arith.constant 1.000000e+00 : f32
    %147 = vector.broadcast %cst_59 : f32 to vector<16x128xf32>
    %148 = arith.divf %147, %146 : vector<16x128xf32>
    %cst_60 = arith.constant 1.06140542 : f32
    %149 = vector.broadcast %cst_60 : f32 to vector<16x128xf32>
    %150 = arith.mulf %149, %148 : vector<16x128xf32>
    %cst_61 = arith.constant -1.45315206 : f32
    %151 = vector.broadcast %cst_61 : f32 to vector<16x128xf32>
    %152 = arith.addf %150, %151 : vector<16x128xf32>
    %153 = arith.mulf %152, %148 : vector<16x128xf32>
    %cst_62 = arith.constant 1.42141378 : f32
    %154 = vector.broadcast %cst_62 : f32 to vector<16x128xf32>
    %155 = arith.addf %153, %154 : vector<16x128xf32>
    %156 = arith.mulf %155, %148 : vector<16x128xf32>
    %cst_63 = arith.constant -0.284496725 : f32
    %157 = vector.broadcast %cst_63 : f32 to vector<16x128xf32>
    %158 = arith.addf %156, %157 : vector<16x128xf32>
    %159 = arith.mulf %158, %148 : vector<16x128xf32>
    %cst_64 = arith.constant 0.254829586 : f32
    %160 = vector.broadcast %cst_64 : f32 to vector<16x128xf32>
    %161 = arith.addf %159, %160 : vector<16x128xf32>
    %162 = arith.mulf %161, %148 : vector<16x128xf32>
    %163 = arith.mulf %142, %142 : vector<16x128xf32>
    %cst_65 = arith.constant 0.000000e+00 : f32
    %164 = vector.broadcast %cst_65 : f32 to vector<16x128xf32>
    %165 = arith.subf %164, %163 : vector<16x128xf32>
    %166 = math.exp %165 : vector<16x128xf32>
    %167 = arith.mulf %162, %166 : vector<16x128xf32>
    %cst_66 = arith.constant 1.000000e+00 : f32
    %168 = vector.broadcast %cst_66 : f32 to vector<16x128xf32>
    %169 = arith.subf %168, %167 : vector<16x128xf32>
    %cst_67 = arith.constant 0.000000e+00 : f32
    %170 = vector.broadcast %cst_67 : f32 to vector<16x128xf32>
    %171 = arith.cmpf oge, %141, %170 : vector<16x128xf32>
    %cst_68 = arith.constant 0.000000e+00 : f32
    %172 = vector.broadcast %cst_68 : f32 to vector<16x128xf32>
    %173 = arith.subf %172, %169 : vector<16x128xf32>
    %174 = arith.select %171, %169, %173 : vector<16x128xi1>, vector<16x128xf32>
    %cst_69 = arith.constant 1.000000e+00 : f32
    %175 = vector.broadcast %cst_69 : f32 to vector<16x128xf32>
    %176 = arith.addf %175, %174 : vector<16x128xf32>
    %177 = arith.mulf %139, %176 : vector<16x128xf32>
    %c0_70 = arith.constant 0 : index
    %c0_71 = arith.constant 0 : index
    %178 = vector.load %arg12[%c0_70, %c0_71] : memref<128x32xf32, #tpu.memory_space<vmem>>, vector<128x32xf32>
    %cst_72 = arith.constant dense<0.000000e+00> : vector<16x32xf32>
    %179 = tpu.matmul %177, %178, %cst_72 {dimension_numbers = #tpu.dot_dimension_numbers<[1], [0], [0], [1], [0, 0, 1, 1], [], []>} : vector<16x128xf32>, vector<128x32xf32>, vector<16x32xf32> -> vector<16x32xf32>
    %180 = arith.addf %108, %179 : vector<16x32xf32>
    %c0_73 = arith.constant 0 : index
    %c0_74 = arith.constant 0 : index
    %181 = vector.load %arg13[%c0_73, %c0_74] : memref<1x32xf32, #tpu.memory_space<vmem>>, vector<1x32xf32>
    %182 = vector.broadcast %181 : vector<1x32xf32> to vector<16x32xf32>
    %183 = arith.addf %180, %182 : vector<16x32xf32>
    %c0_75 = arith.constant 0 : index
    %c0_76 = arith.constant 0 : index
    %184 = vector.load %arg14[%c0_75, %c0_76] : memref<16x32xf32, #tpu.memory_space<vmem>>, vector<16x32xf32>
    tpu.vector_store %arg14[%c0_75, %c0_76], %183 {strides = array<i32>} : memref<16x32xf32, #tpu.memory_space<vmem>>, vector<16x32xf32>,
    return
  }
}

</mosaic_0001>

<llo_original>
// kernel: _custom_block_impl.1
$region0: #{_custom_block_impl.1}
  #allocation0 [shape = 'u32[]', space=smem, size = 0x4, offset = 0x4, fixed_abs, tag = 'smem constant byte address 0x4 - core index']
  #allocation1 [shape = 'u32[144,128]{1,0:T(1,128)}', space=vmem, size = 0x12000, scoped, tag = 'internal scratch']
  %s0 = inlined_call_operand.vmem [shape: f32[16,32], index: 0, kind: input, shape index: {}]
  %s1 = inlined_call_operand.vmem [shape: f32[16,16], index: 1, kind: input, shape index: {}]
  %s2 = inlined_call_operand.vmem [shape: f32[1,32], index: 2, kind: input, shape index: {}]
  %s3 = inlined_call_operand.vmem [shape: f32[1,32], index: 3, kind: input, shape index: {}]
  %s4 = inlined_call_operand.vmem [shape: f32[32,96], index: 4, kind: input, shape index: {}]
  %s5 = inlined_call_operand.vmem [shape: f32[1,96], index: 5, kind: input, shape index: {}]
  %s6 = inlined_call_operand.vmem [shape: f32[32,32], index: 6, kind: input, shape index: {}]
  %s7 = inlined_call_operand.vmem [shape: f32[1,32], index: 7, kind: input, shape index: {}]
  %s8 = inlined_call_operand.vmem [shape: f32[1,32], index: 8, kind: input, shape index: {}]
  %s9 = inlined_call_operand.vmem [shape: f32[1,32], index: 9, kind: input, shape index: {}]
  %s10 = inlined_call_operand.vmem [shape: f32[32,128], index: 10, kind: input, shape index: {}]
  %s11 = inlined_call_operand.vmem [shape: f32[1,128], index: 11, kind: input, shape index: {}]
  %s12 = inlined_call_operand.vmem [shape: f32[128,32], index: 12, kind: input, shape index: {}]
  %s13 = inlined_call_operand.vmem [shape: f32[1,32], index: 13, kind: input, shape index: {}]
  %s14 = inlined_call_operand.hbm [shape: f32[16,32], index: 14, kind: output, shape index: {}]
  %s15 = sld [smem:[#allocation0]]
  $region66: #{_custom_block_impl.1} parent=0
    _
  %s17 = ssub.s32 1, %s15
  %s18 = scalar_select 0, %s17, %s15
  $region1: #{_custom_block_impl.1} parent=0
    #allocation2 [shape = 'u8[8192]{0}', space=vmem, size = 0x2000, scoped, tag = 'output window, operand 0, single buffered']
    #allocation3 [shape = 's32[1]{0}', space=sflag, size = 0x4, scoped, tag = 'scoped memory for _custom_block_impl.1']
    %19 = vsyncpa [#allocation3], 0
    // Predicated region
    $region2: #{_custom_block_impl.1} parent=1 // pred_check
      _
    $region3: #{_custom_block_impl.1} parent=1 // pred_check_branch
      %21 = sbr.rel (0) target = $region5
    $region4: #{_custom_block_impl.1} parent=1 // pred_region
      _
    $region5: #{_custom_block_impl.1} parent=1 // pred_fallthru
      _
    // Predicated region
    $region6: #{_custom_block_impl.1} parent=1 // pred_check
      _
    $region7: #{_custom_block_impl.1} parent=1 // pred_check_branch
      %23 = sbr.rel (0) target = $region9
    $region8: #{_custom_block_impl.1} parent=1 // pred_region
      _
    $region9: #{_custom_block_impl.1} parent=1 // pred_fallthru
      _
    // Predicated region
    $region10: #{_custom_block_impl.1} parent=1 // pred_check
      _
    $region11: #{_custom_block_impl.1} parent=1 // pred_check_branch
      %25 = sbr.rel (0) target = $region13
    $region12: #{_custom_block_impl.1} parent=1 // pred_region
      _
    $region13: #{_custom_block_impl.1} parent=1 // pred_fallthru
      _
    // Predicated region
    $region14: #{_custom_block_impl.1} parent=1 // pred_check
      _
    $region15: #{_custom_block_impl.1} parent=1 // pred_check_branch
      %27 = sbr.rel (0) target = $region17
    $region16: #{_custom_block_impl.1} parent=1 // pred_region
      _
    $region17: #{_custom_block_impl.1} parent=1 // pred_fallthru
      _
    // Predicated region
    $region18: #{_custom_block_impl.1} parent=1 // pred_check
      _
    $region19: #{_custom_block_impl.1} parent=1 // pred_check_branch
      %29 = sbr.rel (0) target = $region21
    $region20: #{_custom_block_impl.1} parent=1 // pred_region
      _
    $region21: #{_custom_block_impl.1} parent=1 // pred_fallthru
      _
    // Predicated region
    $region22: #{_custom_block_impl.1} parent=1 // pred_check
      _
    $region23: #{_custom_block_impl.1} parent=1 // pred_check_branch
      %31 = sbr.rel (0) target = $region25
    $region24: #{_custom_block_impl.1} parent=1 // pred_region
      _
    $region25: #{_custom_block_impl.1} parent=1 // pred_fallthru
      _
    // Predicated region
    $region26: #{_custom_block_impl.1} parent=1 // pred_check
      _
    $region27: #{_custom_block_impl.1} parent=1 // pred_check_branch
      %33 = sbr.rel (0) target = $region29
    $region28: #{_custom_block_impl.1} parent=1 // pred_region
      _
    $region29: #{_custom_block_impl.1} parent=1 // pred_fallthru
      _
    // Predicated region
    $region30: #{_custom_block_impl.1} parent=1 // pred_check
      _
    $region31: #{_custom_block_impl.1} parent=1 // pred_check_branch
      %35 = sbr.rel (0) target = $region33
    $region32: #{_custom_block_impl.1} parent=1 // pred_region
      _
    $region33: #{_custom_block_impl.1} parent=1 // pred_fallthru
      _
    // Predicated region
    $region34: #{_custom_block_impl.1} parent=1 // pred_check
      _
    $region35: #{_custom_block_impl.1} parent=1 // pred_check_branch
      %37 = sbr.rel (0) target = $region37
    $region36: #{_custom_block_impl.1} parent=1 // pred_region
      _
    $region37: #{_custom_block_impl.1} parent=1 // pred_fallthru
      _
    // Predicated region
    $region38: #{_custom_block_impl.1} parent=1 // pred_check
      _
    $region39: #{_custom_block_impl.1} parent=1 // pred_check_branch
      %39 = sbr.rel (0) target = $region41
    $region40: #{_custom_block_impl.1} parent=1 // pred_region
      _
    $region41: #{_custom_block_impl.1} parent=1 // pred_fallthru
      _
    // Predicated region
    $region42: #{_custom_block_impl.1} parent=1 // pred_check
      _
    $region43: #{_custom_block_impl.1} parent=1 // pred_check_branch
      %41 = sbr.rel (0) target = $region45
    $region44: #{_custom_block_impl.1} parent=1 // pred_region
      _
    $region45: #{_custom_block_impl.1} parent=1 // pred_fallthru
      _
    // Predicated region
    $region46: #{_custom_block_impl.1} parent=1 // pred_check
      _
    $region47: #{_custom_block_impl.1} parent=1 // pred_check_branch
      %43 = sbr.rel (0) target = $region49
    $region48: #{_custom_block_impl.1} parent=1 // pred_region
      _
    $region49: #{_custom_block_impl.1} parent=1 // pred_fallthru
      _
    // Predicated region
    $region50: #{_custom_block_impl.1} parent=1 // pred_check
      _
    $region51: #{_custom_block_impl.1} parent=1 // pred_check_branch
      %45 = sbr.rel (0) target = $region53
    $region52: #{_custom_block_impl.1} parent=1 // pred_region
      _
    $region53: #{_custom_block_impl.1} parent=1 // pred_fallthru
      _
    // Predicated region
    $region54: #{_custom_block_impl.1} parent=1 // pred_check
      _
    $region55: #{_custom_block_impl.1} parent=1 // pred_check_branch
      %47 = sbr.rel (0) target = $region57
    $region56: #{_custom_block_impl.1} parent=1 // pred_region
      _
    $region57: #{_custom_block_impl.1} parent=1 // pred_fallthru
      _
    %v48 = vld [vmem:[%s0] sm:$0xff]
    %v49 = vld [vmem:[%s0 + $0x8] sm:$0xff]
    %v50 = vld [vmem:[%s2] sm:$0x1]
    %v51 = vld [vmem:[%s3] sm:$0x1]
    %vm52 = vcmask 261120
    %v53 = vsel %vm52, %v48, 0.0
    %54 = vadd.xlane.f32.xlu0 %v53
    %v55 = vpop.xlane.xlu0 %54
    %v56 = vsel %vm52, %v49, 0.0
    %57 = vadd.xlane.f32.xlu0 %v56
    %v58 = vpop.xlane.xlu0 %57
    %v59 = vrcp.pop 32.0
    %v60 = vmul.f32 %v55, %v59
    %v61 = vmul.f32 %v58, %v59
    %v62 = vsub.f32 %v48, %v60
    %v63 = vsub.f32 %v49, %v61
    %v64 = vmul.f32 %v62, %v62
    %v65 = vmul.f32 %v63, %v63
    %v66 = vsel %vm52, %v64, 0.0
    %67 = vadd.xlane.f32.xlu0 %v66
    %v68 = vpop.xlane.xlu0 %67
    %v69 = vsel %vm52, %v65, 0.0
    %70 = vadd.xlane.f32.xlu0 %v69
    %v71 = vpop.xlane.xlu0 %70
    %v72 = vmul.f32 %v68, %v59
    %v73 = vmul.f32 %v71, %v59
    %v74 = vadd.f32 %v72, 1e-05
    %v75 = vadd.f32 %v73, 1e-05
    %v76 = vrsqrt.pop %v74
    %v77 = vrsqrt.pop %v75
    %v78 = vmul.f32 %v62, %v76
    %v79 = vmul.f32 %v63, %v77
    %v81 = vlaneseq
    %v82 = vshrl.u32 %v81, 7
    %v83 = vsub.s32 0, %v82
    %v84 = vrot.slane %v50, %v83
    %v86 = vmul.f32 %v78, %v84
    %v87 = vmul.f32 %v79, %v84
    %v89 = vlaneseq
    %v90 = vshrl.u32 %v89, 7
    %v91 = vsub.s32 0, %v90
    %v92 = vrot.slane %v51, %v91
    %v94 = vadd.f32 %v86, %v92
    %v95 = vadd.f32 %v87, %v92
    %v96 = vld [vmem:[%s4] sm:$0xff]
    %v97 = vld [vmem:[%s4 + $0x8] sm:$0xff]
    %v98 = vld [vmem:[%s4 + $0x10] sm:$0xff]
    %v99 = vld [vmem:[%s4 + $0x18] sm:$0xff]
    %v100 = vld [vmem:[%s5] sm:$0x1]
    %v102 = vlaneseq
    %v103 = vshrl.u32 %v102, 7
    %v104 = vsub.s32 0, %v103
    %v105 = vrot.slane %v100, %v104
    %v108 = vsel %vm52, %v94, 0
    %v111 = vsel %vm52, %v95, 0
    %113 = vmatprep.subr.mxu0 0.0
    %114 = vmatpush1.msra.mxu0 0.0
    %115 = vmatprep.subr.mxu0 0.0
    %116 = vmatpush1.msra.mxu0 0.0
    %117 = vmatprep.subr.mxu0 0.0
    %118 = vmatpush1.msra.mxu0 0.0
    %119 = vmatprep.subr.mxu0 0.0
    %120 = vmatpush1.msra.mxu0 0.0
    %121 = vmatprep.subr.mxu0 0.0
    %122 = vmatpush1.msra.mxu0 0.0
    %123 = vmatprep.subr.mxu0 0.0
    %124 = vmatpush1.msra.mxu0 0.0
    %125 = vmatprep.subr.mxu0 0.0
    %126 = vmatpush1.msra.mxu0 0.0
    %127 = vmatprep.subr.mxu0 0.0
    %128 = vmatpush1.msra.mxu0 0.0
    %129 = vmatprep.subr.mxu0 0.0
    %130 = vmatpush1.msra.mxu0 0.0
    %131 = vmatprep.subr.mxu0 0.0
    %132 = vmatpush1.msra.mxu0 0.0
    %133 = vmatprep.subr.mxu0 0.0
    %134 = vmatpush1.msra.mxu0 0.0
    %135 = vmatprep.subr.mxu0 0.0
    %136 = vmatpush1.msra.mxu0 0.0
    %137 = vmatprep.subr.mxu0 0.0
    %138 = vmatpush1.msra.mxu0 %v99
    %139 = vmatprep.subr.mxu0 0.0
    %140 = vmatpush1.msra.mxu0 %v98
    %141 = vmatprep.subr.mxu0 0.0
    %142 = vmatpush1.msra.mxu0 %v97
    %143 = vmatprep.subr.mxu0 0.0
    %144 = vmatpush1.msra.mxu0 %v96
    %145 = vmatprep.subr.mxu0 0.0
    %146 = vmatpush2.msra.mxu0 0.0
    %147 = vmatprep.subr.mxu0 0.0
    %148 = vmatpush2.msra.mxu0 0.0
    %149 = vmatprep.subr.mxu0 0.0
    %150 = vmatpush2.msra.mxu0 0.0
    %151 = vmatprep.subr.mxu0 0.0
    %152 = vmatpush2.msra.mxu0 0.0
    %153 = vmatprep.subr.mxu0 0.0
    %154 = vmatpush2.msra.mxu0 0.0
    %155 = vmatprep.subr.mxu0 0.0
    %156 = vmatpush2.msra.mxu0 0.0
    %157 = vmatprep.subr.mxu0 0.0
    %158 = vmatpush2.msra.mxu0 0.0
    %159 = vmatprep.subr.mxu0 0.0
    %160 = vmatpush2.msra.mxu0 0.0
    %161 = vmatprep.subr.mxu0 0.0
    %162 = vmatpush2.msra.mxu0 0.0
    %163 = vmatprep.subr.mxu0 0.0
    %164 = vmatpush2.msra.mxu0 0.0
    %165 = vmatprep.subr.mxu0 0.0
    %166 = vmatpush2.msra.mxu0 0.0
    %167 = vmatprep.subr.mxu0 0.0
    %168 = vmatpush2.msra.mxu0 0.0
    %169 = vmatprep.subr.mxu0 0.0
    %170 = vmatpush2.msra.mxu0 0.0
    %171 = vmatprep.subr.mxu0 0.0
    %172 = vmatpush2.msra.mxu0 0.0
    %173 = vmatprep.subr.mxu0 0.0
    %174 = vmatpush2.msra.mxu0 0.0
    %175 = vmatprep.subr.mxu0 0.0
    %176 = vmatpush2.msra.mxu0 0.0
    %177 = vmatprep.mubr.f32.mxu0 0.0
    %178 = vmatmul.mubr.f32.gmra.mxu0 %v108
    %v179 = vpop.f32.mrf.mxu0
    %v180 = vadd.f32 %v105, %v179
    %v181 = vpop.f32.mrf.mxu0
    %182 = vmatprep.mubr.f32.mxu0 0.0
    %183 = vmatmul.mubr.f32.gmra.mxu0 %v111
    %v184 = vpop.f32.mrf.mxu0
    %v185 = vadd.f32 %v105, %v184
    %v186 = vpop.f32.mrf.mxu0
    %187 = vdwg.mxu0
    %v188 = vld [vmem:[%s1] sm:$0xff]
    %v189 = vld [vmem:[%s1 + $0x8] sm:$0xff]
    %v190 = vld [vmem:[%s6] sm:$0xff]
    %v191 = vld [vmem:[%s6 + $0x8] sm:$0xff]
    %v192 = vld [vmem:[%s6 + $0x10] sm:$0xff]
    %v193 = vld [vmem:[%s6 + $0x18] sm:$0xff]
    %196 = vrot.lane.b32.xlu0 %v180, 96
    %v197 = vpop.permute.xlu0 %196
    %198 = vrot.lane.b32.xlu0 %v185, 96
    %v199 = vpop.permute.xlu0 %198
    %vm200 = vcmask 64512
    %v201 = vsel %vm200, %v180, 0
    %v203 = vsel %vm200, %v185, 0
    %v205 = vsel %vm200, %v197, 0
    %v207 = vsel %vm200, %v199, 0
    %209 = vmatprep.subr.mxu0 0.0
    %210 = vmatpush1.xpose.msra.mxu0 0.0
    %211 = vmatprep.subr.mxu0 0.0
    %212 = vmatpush1.xpose.msra.mxu0 0.0
    %213 = vmatprep.subr.mxu0 0.0
    %214 = vmatpush1.xpose.msra.mxu0 0.0
    %215 = vmatprep.subr.mxu0 0.0
    %216 = vmatpush1.xpose.msra.mxu0 0.0
    %217 = vmatprep.subr.mxu0 0.0
    %218 = vmatpush1.xpose.msra.mxu0 0.0
    %219 = vmatprep.subr.mxu0 0.0
    %220 = vmatpush1.xpose.msra.mxu0 0.0
    %221 = vmatprep.subr.mxu0 0.0
    %222 = vmatpush1.xpose.msra.mxu0 0.0
    %223 = vmatprep.subr.mxu0 0.0
    %224 = vmatpush1.xpose.msra.mxu0 0.0
    %225 = vmatprep.subr.mxu0 0.0
    %226 = vmatpush1.xpose.msra.mxu0 0.0
    %227 = vmatprep.subr.mxu0 0.0
    %228 = vmatpush1.xpose.msra.mxu0 0.0
    %229 = vmatprep.subr.mxu0 0.0
    %230 = vmatpush1.xpose.msra.mxu0 0.0
    %231 = vmatprep.subr.mxu0 0.0
    %232 = vmatpush1.xpose.msra.mxu0 0.0
    %233 = vmatprep.subr.mxu0 0.0
    %234 = vmatpush1.xpose.msra.mxu0 0.0
    %235 = vmatprep.subr.mxu0 0.0
    %236 = vmatpush1.xpose.msra.mxu0 0.0
    %237 = vmatprep.subr.mxu0 0.0
    %238 = vmatpush1.xpose.msra.mxu0 %v207
    %239 = vmatprep.subr.mxu0 0.0
    %240 = vmatpush1.xpose.msra.mxu0 %v205
    %241 = vmatprep.subr.mxu0 0.0
    %242 = vmatpush2.xpose.msra.mxu0 0.0
    %243 = vmatprep.subr.mxu0 0.0
    %244 = vmatpush2.xpose.msra.mxu0 0.0
    %245 = vmatprep.subr.mxu0 0.0
    %246 = vmatpush2.xpose.msra.mxu0 0.0
    %247 = vmatprep.subr.mxu0 0.0
    %248 = vmatpush2.xpose.msra.mxu0 0.0
    %249 = vmatprep.subr.mxu0 0.0
    %250 = vmatpush2.xpose.msra.mxu0 0.0
    %251 = vmatprep.subr.mxu0 0.0
    %252 = vmatpush2.xpose.msra.mxu0 0.0
    %253 = vmatprep.subr.mxu0 0.0
    %254 = vmatpush2.xpose.msra.mxu0 0.0
    %255 = vmatprep.subr.mxu0 0.0
    %256 = vmatpush2.xpose.msra.mxu0 0.0
    %257 = vmatprep.subr.mxu0 0.0
    %258 = vmatpush2.xpose.msra.mxu0 0.0
    %259 = vmatprep.subr.mxu0 0.0
    %260 = vmatpush2.xpose.msra.mxu0 0.0
    %261 = vmatprep.subr.mxu0 0.0
    %262 = vmatpush2.xpose.msra.mxu0 0.0
    %263 = vmatprep.subr.mxu0 0.0
    %264 = vmatpush2.xpose.msra.mxu0 0.0
    %265 = vmatprep.subr.mxu0 0.0
    %266 = vmatpush2.xpose.msra.mxu0 0.0
    %267 = vmatprep.subr.mxu0 0.0
    %268 = vmatpush2.xpose.msra.mxu0 0.0
    %269 = vmatprep.subr.mxu0 0.0
    %270 = vmatpush2.xpose.msra.mxu0 0.0
    %271 = vmatprep.subr.mxu0 0.0
    %272 = vmatpush2.xpose.msra.mxu0 0.0
    %273 = vmatprep.mubr.f32.mxu0 0.0
    %274 = vmatmul.mubr.f32.gmra.mxu0 %v201
    %v275 = vpop.f32.mrf.mxu0
    %v276 = vadd.f32 %v188, %v275
    %v277 = vpop.f32.mrf.mxu0
    %278 = vmatprep.mubr.f32.mxu0 0.0
    %279 = vmatmul.mubr.f32.gmra.mxu0 %v203
    %v280 = vpop.f32.mrf.mxu0
    %v281 = vadd.f32 %v189, %v280
    %v282 = vpop.f32.mrf.mxu0
    %283 = vdwg.mxu0
    %vm284 = vcmask 130048
    %v285 = vsel %vm284, %v276, -inf
    %286 = vmax.xlane.f32.xlu0 %v285
    %v287 = vpop.xlane.xlu0 %286
    %v288 = vsel %vm284, %v281, -inf
    %289 = vmax.xlane.f32.xlu0 %v288
    %v290 = vpop.xlane.xlu0 %289
    %v291 = vsub.f32 %v276, %v287
    %v292 = vsub.f32 %v281, %v290
    %v293 = vmul.f32 %v291, 1.442695
    %v294 = vpow.pop %v293
    %v295 = vmul.f32 %v292, 1.442695
    %v296 = vpow.pop %v295
    %v297 = vsel %vm284, %v294, 0.0
    %298 = vadd.xlane.f32.xlu0 %v297
    %v299 = vpop.xlane.xlu0 %298
    %v300 = vsel %vm284, %v296, 0.0
    %301 = vadd.xlane.f32.xlu0 %v300
    %v302 = vpop.xlane.xlu0 %301
    %v303 = vrcp.pop %v299
    %v304 = vmul.f32 %v294, %v303
    %v305 = vrcp.pop %v302
    %v306 = vmul.f32 %v296, %v305
    %307 = vrot.lane.b32.xlu0 %v180, 64
    %v308 = vpop.permute.xlu0 %307
    %309 = vrot.lane.b32.xlu0 %v185, 64
    %v310 = vpop.permute.xlu0 %309
    %v314 = vsel %vm284, %v304, 0
    %v317 = vsel %vm284, %v306, 0
    %319 = vmatprep.subr.mxu0 0.0
    %320 = vmatpush1.msra.mxu0 0.0
    %321 = vmatprep.subr.mxu0 0.0
    %322 = vmatpush1.msra.mxu0 0.0
    %323 = vmatprep.subr.mxu0 0.0
    %324 = vmatpush1.msra.mxu0 0.0
    %325 = vmatprep.subr.mxu0 0.0
    %326 = vmatpush1.msra.mxu0 0.0
    %327 = vmatprep.subr.mxu0 0.0
    %328 = vmatpush1.msra.mxu0 0.0
    %329 = vmatprep.subr.mxu0 0.0
    %330 = vmatpush1.msra.mxu0 0.0
    %331 = vmatprep.subr.mxu0 0.0
    %332 = vmatpush1.msra.mxu0 0.0
    %333 = vmatprep.subr.mxu0 0.0
    %334 = vmatpush1.msra.mxu0 0.0
    %335 = vmatprep.subr.mxu0 0.0
    %336 = vmatpush1.msra.mxu0 0.0
    %337 = vmatprep.subr.mxu0 0.0
    %338 = vmatpush1.msra.mxu0 0.0
    %339 = vmatprep.subr.mxu0 0.0
    %340 = vmatpush1.msra.mxu0 0.0
    %341 = vmatprep.subr.mxu0 0.0
    %342 = vmatpush1.msra.mxu0 0.0
    %343 = vmatprep.subr.mxu0 0.0
    %344 = vmatpush1.msra.mxu0 0.0
    %345 = vmatprep.subr.mxu0 0.0
    %346 = vmatpush1.msra.mxu0 0.0
    %347 = vmatprep.subr.mxu0 0.0
    %348 = vmatpush1.msra.mxu0 %v310
    %349 = vmatprep.subr.mxu0 0.0
    %350 = vmatpush1.msra.mxu0 %v308
    %351 = vmatprep.subr.mxu0 0.0
    %352 = vmatpush2.msra.mxu0 0.0
    %353 = vmatprep.subr.mxu0 0.0
    %354 = vmatpush2.msra.mxu0 0.0
    %355 = vmatprep.subr.mxu0 0.0
    %356 = vmatpush2.msra.mxu0 0.0
    %357 = vmatprep.subr.mxu0 0.0
    %358 = vmatpush2.msra.mxu0 0.0
    %359 = vmatprep.subr.mxu0 0.0
    %360 = vmatpush2.msra.mxu0 0.0
    %361 = vmatprep.subr.mxu0 0.0
    %362 = vmatpush2.msra.mxu0 0.0
    %363 = vmatprep.subr.mxu0 0.0
    %364 = vmatpush2.msra.mxu0 0.0
    %365 = vmatprep.subr.mxu0 0.0
    %366 = vmatpush2.msra.mxu0 0.0
    %367 = vmatprep.subr.mxu0 0.0
    %368 = vmatpush2.msra.mxu0 0.0
    %369 = vmatprep.subr.mxu0 0.0
    %370 = vmatpush2.msra.mxu0 0.0
    %371 = vmatprep.subr.mxu0 0.0
    %372 = vmatpush2.msra.mxu0 0.0
    %373 = vmatprep.subr.mxu0 0.0
    %374 = vmatpush2.msra.mxu0 0.0
    %375 = vmatprep.subr.mxu0 0.0
    %376 = vmatpush2.msra.mxu0 0.0
    %377 = vmatprep.subr.mxu0 0.0
    %378 = vmatpush2.msra.mxu0 0.0
    %379 = vmatprep.subr.mxu0 0.0
    %380 = vmatpush2.msra.mxu0 0.0
    %381 = vmatprep.subr.mxu0 0.0
    %382 = vmatpush2.msra.mxu0 0.0
    %383 = vmatprep.mubr.f32.mxu0 0.0
    %384 = vmatmul.mubr.f32.gmra.mxu0 %v314
    %v385 = vpop.f32.mrf.mxu0
    %v386 = vadd.f32 0.0, %v385
    %v387 = vpop.f32.mrf.mxu0
    %388 = vmatprep.mubr.f32.mxu0 0.0
    %389 = vmatmul.mubr.f32.gmra.mxu0 %v317
    %v390 = vpop.f32.mrf.mxu0
    %v391 = vadd.f32 0.0, %v390
    %v392 = vpop.f32.mrf.mxu0
    %393 = vdwg.mxu0
    %394 = vrot.lane.b32.xlu0 %v180, 120
    %v395 = vpop.permute.xlu0 %394
    %396 = vrot.lane.b32.xlu0 %v185, 120
    %v397 = vpop.permute.xlu0 %396
    %398 = vrot.lane.b32.xlu0 %v180, 88
    %v399 = vpop.permute.xlu0 %398
    %400 = vrot.lane.b32.xlu0 %v185, 88
    %v401 = vpop.permute.xlu0 %400
    %v402 = vsel %vm200, %v395, 0
    %v404 = vsel %vm200, %v397, 0
    %v406 = vsel %vm200, %v399, 0
    %v408 = vsel %vm200, %v401, 0
    %410 = vmatprep.subr.mxu0 0.0
    %411 = vmatpush1.xpose.msra.mxu0 0.0
    %412 = vmatprep.subr.mxu0 0.0
    %413 = vmatpush1.xpose.msra.mxu0 0.0
    %414 = vmatprep.subr.mxu0 0.0
    %415 = vmatpush1.xpose.msra.mxu0 0.0
    %416 = vmatprep.subr.mxu0 0.0
    %417 = vmatpush1.xpose.msra.mxu0 0.0
    %418 = vmatprep.subr.mxu0 0.0
    %419 = vmatpush1.xpose.msra.mxu0 0.0
    %420 = vmatprep.subr.mxu0 0.0
    %421 = vmatpush1.xpose.msra.mxu0 0.0
    %422 = vmatprep.subr.mxu0 0.0
    %423 = vmatpush1.xpose.msra.mxu0 0.0
    %424 = vmatprep.subr.mxu0 0.0
    %425 = vmatpush1.xpose.msra.mxu0 0.0
    %426 = vmatprep.subr.mxu0 0.0
    %427 = vmatpush1.xpose.msra.mxu0 0.0
    %428 = vmatprep.subr.mxu0 0.0
    %429 = vmatpush1.xpose.msra.mxu0 0.0
    %430 = vmatprep.subr.mxu0 0.0
    %431 = vmatpush1.xpose.msra.mxu0 0.0
    %432 = vmatprep.subr.mxu0 0.0
    %433 = vmatpush1.xpose.msra.mxu0 0.0
    %434 = vmatprep.subr.mxu0 0.0
    %435 = vmatpush1.xpose.msra.mxu0 0.0
    %436 = vmatprep.subr.mxu0 0.0
    %437 = vmatpush1.xpose.msra.mxu0 0.0
    %438 = vmatprep.subr.mxu0 0.0
    %439 = vmatpush1.xpose.msra.mxu0 %v408
    %440 = vmatprep.subr.mxu0 0.0
    %441 = vmatpush1.xpose.msra.mxu0 %v406
    %442 = vmatprep.subr.mxu0 0.0
    %443 = vmatpush2.xpose.msra.mxu0 0.0
    %444 = vmatprep.subr.mxu0 0.0
    %445 = vmatpush2.xpose.msra.mxu0 0.0
    %446 = vmatprep.subr.mxu0 0.0
    %447 = vmatpush2.xpose.msra.mxu0 0.0
    %448 = vmatprep.subr.mxu0 0.0
    %449 = vmatpush2.xpose.msra.mxu0 0.0
    %450 = vmatprep.subr.mxu0 0.0
    %451 = vmatpush2.xpose.msra.mxu0 0.0
    %452 = vmatprep.subr.mxu0 0.0
    %453 = vmatpush2.xpose.msra.mxu0 0.0
    %454 = vmatprep.subr.mxu0 0.0
    %455 = vmatpush2.xpose.msra.mxu0 0.0
    %456 = vmatprep.subr.mxu0 0.0
    %457 = vmatpush2.xpose.msra.mxu0 0.0
    %458 = vmatprep.subr.mxu0 0.0
    %459 = vmatpush2.xpose.msra.mxu0 0.0
    %460 = vmatprep.subr.mxu0 0.0
    %461 = vmatpush2.xpose.msra.mxu0 0.0
    %462 = vmatprep.subr.mxu0 0.0
    %463 = vmatpush2.xpose.msra.mxu0 0.0
    %464 = vmatprep.subr.mxu0 0.0
    %465 = vmatpush2.xpose.msra.mxu0 0.0
    %466 = vmatprep.subr.mxu0 0.0
    %467 = vmatpush2.xpose.msra.mxu0 0.0
    %468 = vmatprep.subr.mxu0 0.0
    %469 = vmatpush2.xpose.msra.mxu0 0.0
    %470 = vmatprep.subr.mxu0 0.0
    %471 = vmatpush2.xpose.msra.mxu0 0.0
    %472 = vmatprep.subr.mxu0 0.0
    %473 = vmatpush2.xpose.msra.mxu0 0.0
    %474 = vmatprep.mubr.f32.mxu0 0.0
    %475 = vmatmul.mubr.f32.gmra.mxu0 %v402
    %v476 = vpop.f32.mrf.mxu0
    %v477 = vadd.f32 %v188, %v476
    %v478 = vpop.f32.mrf.mxu0
    %479 = vmatprep.mubr.f32.mxu0 0.0
    %480 = vmatmul.mubr.f32.gmra.mxu0 %v404
    %v481 = vpop.f32.mrf.mxu0
    %v482 = vadd.f32 %v189, %v481
    %v483 = vpop.f32.mrf.mxu0
    %484 = vdwg.mxu0
    %v485 = vsel %vm284, %v477, -inf
    %486 = vmax.xlane.f32.xlu0 %v485
    %v487 = vpop.xlane.xlu0 %486
    %v488 = vsel %vm284, %v482, -inf
    %489 = vmax.xlane.f32.xlu0 %v488
    %v490 = vpop.xlane.xlu0 %489
    %v491 = vsub.f32 %v477, %v487
    %v492 = vsub.f32 %v482, %v490
    %v493 = vmul.f32 %v491, 1.442695
    %v494 = vpow.pop %v493
    %v495 = vmul.f32 %v492, 1.442695
    %v496 = vpow.pop %v495
    %v497 = vsel %vm284, %v494, 0.0
    %498 = vadd.xlane.f32.xlu0 %v497
    %v499 = vpop.xlane.xlu0 %498
    %v500 = vsel %vm284, %v496, 0.0
    %501 = vadd.xlane.f32.xlu0 %v500
    %v502 = vpop.xlane.xlu0 %501
    %v503 = vrcp.pop %v499
    %v504 = vmul.f32 %v494, %v503
    %v505 = vrcp.pop %v502
    %v506 = vmul.f32 %v496, %v505
    %507 = vrot.lane.b32.xlu0 %v180, 56
    %v508 = vpop.permute.xlu0 %507
    %509 = vrot.lane.b32.xlu0 %v185, 56
    %v510 = vpop.permute.xlu0 %509
    %v514 = vsel %vm284, %v504, 0
    %v517 = vsel %vm284, %v506, 0
    %519 = vmatprep.subr.mxu0 0.0
    %520 = vmatpush1.msra.mxu0 0.0
    %521 = vmatprep.subr.mxu0 0.0
    %522 = vmatpush1.msra.mxu0 0.0
    %523 = vmatprep.subr.mxu0 0.0
    %524 = vmatpush1.msra.mxu0 0.0
    %525 = vmatprep.subr.mxu0 0.0
    %526 = vmatpush1.msra.mxu0 0.0
    %527 = vmatprep.subr.mxu0 0.0
    %528 = vmatpush1.msra.mxu0 0.0
    %529 = vmatprep.subr.mxu0 0.0
    %530 = vmatpush1.msra.mxu0 0.0
    %531 = vmatprep.subr.mxu0 0.0
    %532 = vmatpush1.msra.mxu0 0.0
    %533 = vmatprep.subr.mxu0 0.0
    %534 = vmatpush1.msra.mxu0 0.0
    %535 = vmatprep.subr.mxu0 0.0
    %536 = vmatpush1.msra.mxu0 0.0
    %537 = vmatprep.subr.mxu0 0.0
    %538 = vmatpush1.msra.mxu0 0.0
    %539 = vmatprep.subr.mxu0 0.0
    %540 = vmatpush1.msra.mxu0 0.0
    %541 = vmatprep.subr.mxu0 0.0
    %542 = vmatpush1.msra.mxu0 0.0
    %543 = vmatprep.subr.mxu0 0.0
    %544 = vmatpush1.msra.mxu0 0.0
    %545 = vmatprep.subr.mxu0 0.0
    %546 = vmatpush1.msra.mxu0 0.0
    %547 = vmatprep.subr.mxu0 0.0
    %548 = vmatpush1.msra.mxu0 %v510
    %549 = vmatprep.subr.mxu0 0.0
    %550 = vmatpush1.msra.mxu0 %v508
    %551 = vmatprep.subr.mxu0 0.0
    %552 = vmatpush2.msra.mxu0 0.0
    %553 = vmatprep.subr.mxu0 0.0
    %554 = vmatpush2.msra.mxu0 0.0
    %555 = vmatprep.subr.mxu0 0.0
    %556 = vmatpush2.msra.mxu0 0.0
    %557 = vmatprep.subr.mxu0 0.0
    %558 = vmatpush2.msra.mxu0 0.0
    %559 = vmatprep.subr.mxu0 0.0
    %560 = vmatpush2.msra.mxu0 0.0
    %561 = vmatprep.subr.mxu0 0.0
    %562 = vmatpush2.msra.mxu0 0.0
    %563 = vmatprep.subr.mxu0 0.0
    %564 = vmatpush2.msra.mxu0 0.0
    %565 = vmatprep.subr.mxu0 0.0
    %566 = vmatpush2.msra.mxu0 0.0
    %567 = vmatprep.subr.mxu0 0.0
    %568 = vmatpush2.msra.mxu0 0.0
    %569 = vmatprep.subr.mxu0 0.0
    %570 = vmatpush2.msra.mxu0 0.0
    %571 = vmatprep.subr.mxu0 0.0
    %572 = vmatpush2.msra.mxu0 0.0
    %573 = vmatprep.subr.mxu0 0.0
    %574 = vmatpush2.msra.mxu0 0.0
    %575 = vmatprep.subr.mxu0 0.0
    %576 = vmatpush2.msra.mxu0 0.0
    %577 = vmatprep.subr.mxu0 0.0
    %578 = vmatpush2.msra.mxu0 0.0
    %579 = vmatprep.subr.mxu0 0.0
    %580 = vmatpush2.msra.mxu0 0.0
    %581 = vmatprep.subr.mxu0 0.0
    %582 = vmatpush2.msra.mxu0 0.0
    %583 = vmatprep.mubr.f32.mxu0 0.0
    %584 = vmatmul.mubr.f32.gmra.mxu0 %v514
    %v585 = vpop.f32.mrf.mxu0
    %v586 = vadd.f32 0.0, %v585
    %v587 = vpop.f32.mrf.mxu0
    %588 = vmatprep.mubr.f32.mxu0 0.0
    %589 = vmatmul.mubr.f32.gmra.mxu0 %v517
    %v590 = vpop.f32.mrf.mxu0
    %v591 = vadd.f32 0.0, %v590
    %v592 = vpop.f32.mrf.mxu0
    %593 = vdwg.mxu0
    %v595 = vsel %vm200, %v586, 0
    %v598 = vsel %vm200, %v591, 0
    %600 = vmatprep.subr.mxu0 0.0
    %601 = vmatpush1.msra.mxu0 0.0
    %602 = vmatprep.subr.mxu0 0.0
    %603 = vmatpush1.msra.mxu0 0.0
    %604 = vmatprep.subr.mxu0 0.0
    %605 = vmatpush1.msra.mxu0 0.0
    %606 = vmatprep.subr.mxu0 0.0
    %607 = vmatpush1.msra.mxu0 0.0
    %608 = vmatprep.subr.mxu0 0.0
    %609 = vmatpush1.msra.mxu0 0.0
    %610 = vmatprep.subr.mxu0 0.0
    %611 = vmatpush1.msra.mxu0 0.0
    %612 = vmatprep.subr.mxu0 0.0
    %613 = vmatpush1.msra.mxu0 0.0
    %614 = vmatprep.subr.mxu0 0.0
    %615 = vmatpush1.msra.mxu0 0.0
    %616 = vmatprep.subr.mxu0 0.0
    %617 = vmatpush1.msra.mxu0 0.0
    %618 = vmatprep.subr.mxu0 0.0
    %619 = vmatpush1.msra.mxu0 0.0
    %620 = vmatprep.subr.mxu0 0.0
    %621 = vmatpush1.msra.mxu0 0.0
    %622 = vmatprep.subr.mxu0 0.0
    %623 = vmatpush1.msra.mxu0 0.0
    %624 = vmatprep.subr.mxu0 0.0
    %625 = vmatpush1.msra.mxu0 0.0
    %626 = vmatprep.subr.mxu0 0.0
    %627 = vmatpush1.msra.mxu0 0.0
    %628 = vmatprep.subr.mxu0 0.0
    %629 = vmatpush1.msra.mxu0 0.0
    %630 = vmatprep.subr.mxu0 0.0
    %631 = vmatpush1.msra.mxu0 %v191
    %632 = vmatprep.subr.mxu0 0.0
    %633 = vmatpush2.msra.mxu0 0.0
    %634 = vmatprep.subr.mxu0 0.0
    %635 = vmatpush2.msra.mxu0 0.0
    %636 = vmatprep.subr.mxu0 0.0
    %637 = vmatpush2.msra.mxu0 0.0
    %638 = vmatprep.subr.mxu0 0.0
    %639 = vmatpush2.msra.mxu0 0.0
    %640 = vmatprep.subr.mxu0 0.0
    %641 = vmatpush2.msra.mxu0 0.0
    %642 = vmatprep.subr.mxu0 0.0
    %643 = vmatpush2.msra.mxu0 0.0
    %644 = vmatprep.subr.mxu0 0.0
    %645 = vmatpush2.msra.mxu0 0.0
    %646 = vmatprep.subr.mxu0 0.0
    %647 = vmatpush2.msra.mxu0 0.0
    %648 = vmatprep.subr.mxu0 0.0
    %649 = vmatpush2.msra.mxu0 0.0
    %650 = vmatprep.subr.mxu0 0.0
    %651 = vmatpush2.msra.mxu0 0.0
    %652 = vmatprep.subr.mxu0 0.0
    %653 = vmatpush2.msra.mxu0 0.0
    %654 = vmatprep.subr.mxu0 0.0
    %655 = vmatpush2.msra.mxu0 0.0
    %656 = vmatprep.subr.mxu0 0.0
    %657 = vmatpush2.msra.mxu0 0.0
    %658 = vmatprep.subr.mxu0 0.0
    %659 = vmatpush2.msra.mxu0 0.0
    %660 = vmatprep.subr.mxu0 0.0
    %661 = vmatpush2.msra.mxu0 0.0
    %662 = vmatprep.subr.mxu0 0.0
    %663 = vmatpush2.msra.mxu0 0.0
    %664 = vmatprep.mubr.f32.mxu0 0.0
    %665 = vmatmul.mubr.f32.gmra.mxu0 %v595
    %v666 = vpop.f32.mrf.mxu0
    %v667 = vadd.f32 0.0, %v666
    %v668 = vpop.f32.mrf.mxu0
    %669 = vmatprep.mubr.f32.mxu0 0.0
    %670 = vmatmul.mubr.f32.gmra.mxu0 %v598
    %v671 = vpop.f32.mrf.mxu0
    %v672 = vadd.f32 0.0, %v671
    %v673 = vpop.f32.mrf.mxu0
    %674 = vdwg.mxu0
    %v676 = vsel %vm200, %v386, 0
    %v679 = vsel %vm200, %v391, 0
    %681 = vmatprep.subr.mxu0 0.0
    %682 = vmatpush1.msra.mxu0 0.0
    %683 = vmatprep.subr.mxu0 0.0
    %684 = vmatpush1.msra.mxu0 0.0
    %685 = vmatprep.subr.mxu0 0.0
    %686 = vmatpush1.msra.mxu0 0.0
    %687 = vmatprep.subr.mxu0 0.0
    %688 = vmatpush1.msra.mxu0 0.0
    %689 = vmatprep.subr.mxu0 0.0
    %690 = vmatpush1.msra.mxu0 0.0
    %691 = vmatprep.subr.mxu0 0.0
    %692 = vmatpush1.msra.mxu0 0.0
    %693 = vmatprep.subr.mxu0 0.0
    %694 = vmatpush1.msra.mxu0 0.0
    %695 = vmatprep.subr.mxu0 0.0
    %696 = vmatpush1.msra.mxu0 0.0
    %697 = vmatprep.subr.mxu0 0.0
    %698 = vmatpush1.msra.mxu0 0.0
    %699 = vmatprep.subr.mxu0 0.0
    %700 = vmatpush1.msra.mxu0 0.0
    %701 = vmatprep.subr.mxu0 0.0
    %702 = vmatpush1.msra.mxu0 0.0
    %703 = vmatprep.subr.mxu0 0.0
    %704 = vmatpush1.msra.mxu0 0.0
    %705 = vmatprep.subr.mxu0 0.0
    %706 = vmatpush1.msra.mxu0 0.0
    %707 = vmatprep.subr.mxu0 0.0
    %708 = vmatpush1.msra.mxu0 0.0
    %709 = vmatprep.subr.mxu0 0.0
    %710 = vmatpush1.msra.mxu0 0.0
    %711 = vmatprep.subr.mxu0 0.0
    %712 = vmatpush1.msra.mxu0 %v190
    %713 = vmatprep.subr.mxu0 0.0
    %714 = vmatpush2.msra.mxu0 0.0
    %715 = vmatprep.subr.mxu0 0.0
    %716 = vmatpush2.msra.mxu0 0.0
    %717 = vmatprep.subr.mxu0 0.0
    %718 = vmatpush2.msra.mxu0 0.0
    %719 = vmatprep.subr.mxu0 0.0
    %720 = vmatpush2.msra.mxu0 0.0
    %721 = vmatprep.subr.mxu0 0.0
    %722 = vmatpush2.msra.mxu0 0.0
    %723 = vmatprep.subr.mxu0 0.0
    %724 = vmatpush2.msra.mxu0 0.0
    %725 = vmatprep.subr.mxu0 0.0
    %726 = vmatpush2.msra.mxu0 0.0
    %727 = vmatprep.subr.mxu0 0.0
    %728 = vmatpush2.msra.mxu0 0.0
    %729 = vmatprep.subr.mxu0 0.0
    %730 = vmatpush2.msra.mxu0 0.0
    %731 = vmatprep.subr.mxu0 0.0
    %732 = vmatpush2.msra.mxu0 0.0
    %733 = vmatprep.subr.mxu0 0.0
    %734 = vmatpush2.msra.mxu0 0.0
    %735 = vmatprep.subr.mxu0 0.0
    %736 = vmatpush2.msra.mxu0 0.0
    %737 = vmatprep.subr.mxu0 0.0
    %738 = vmatpush2.msra.mxu0 0.0
    %739 = vmatprep.subr.mxu0 0.0
    %740 = vmatpush2.msra.mxu0 0.0
    %741 = vmatprep.subr.mxu0 0.0
    %742 = vmatpush2.msra.mxu0 0.0
    %743 = vmatprep.subr.mxu0 0.0
    %744 = vmatpush2.msra.mxu0 0.0
    %745 = vmatprep.mubr.f32.mxu0 0.0
    %746 = vmatmul.mubr.f32.gmra.mxu0 %v676
    %v747 = vpop.f32.mrf.mxu0
    %v748 = vadd.f32 %v667, %v747
    %v749 = vpop.f32.mrf.mxu0
    %750 = vmatprep.mubr.f32.mxu0 0.0
    %751 = vmatmul.mubr.f32.gmra.mxu0 %v679
    %v752 = vpop.f32.mrf.mxu0
    %v753 = vadd.f32 %v672, %v752
    %v754 = vpop.f32.mrf.mxu0
    %755 = vdwg.mxu0
    %756 = vrot.lane.b32.xlu0 %v180, 112
    %v757 = vpop.permute.xlu0 %756
    %758 = vrot.lane.b32.xlu0 %v185, 112
    %v759 = vpop.permute.xlu0 %758
    %760 = vrot.lane.b32.xlu0 %v180, 80
    %v761 = vpop.permute.xlu0 %760
    %762 = vrot.lane.b32.xlu0 %v185, 80
    %v763 = vpop.permute.xlu0 %762
    %v764 = vsel %vm200, %v757, 0
    %v766 = vsel %vm200, %v759, 0
    %v768 = vsel %vm200, %v761, 0
    %v770 = vsel %vm200, %v763, 0
    %772 = vmatprep.subr.mxu0 0.0
    %773 = vmatpush1.xpose.msra.mxu0 0.0
    %774 = vmatprep.subr.mxu0 0.0
    %775 = vmatpush1.xpose.msra.mxu0 0.0
    %776 = vmatprep.subr.mxu0 0.0
    %777 = vmatpush1.xpose.msra.mxu0 0.0
    %778 = vmatprep.subr.mxu0 0.0
    %779 = vmatpush1.xpose.msra.mxu0 0.0
    %780 = vmatprep.subr.mxu0 0.0
    %781 = vmatpush1.xpose.msra.mxu0 0.0
    %782 = vmatprep.subr.mxu0 0.0
    %783 = vmatpush1.xpose.msra.mxu0 0.0
    %784 = vmatprep.subr.mxu0 0.0
    %785 = vmatpush1.xpose.msra.mxu0 0.0
    %786 = vmatprep.subr.mxu0 0.0
    %787 = vmatpush1.xpose.msra.mxu0 0.0
    %788 = vmatprep.subr.mxu0 0.0
    %789 = vmatpush1.xpose.msra.mxu0 0.0
    %790 = vmatprep.subr.mxu0 0.0
    %791 = vmatpush1.xpose.msra.mxu0 0.0
    %792 = vmatprep.subr.mxu0 0.0
    %793 = vmatpush1.xpose.msra.mxu0 0.0
    %794 = vmatprep.subr.mxu0 0.0
    %795 = vmatpush1.xpose.msra.mxu0 0.0
    %796 = vmatprep.subr.mxu0 0.0
    %797 = vmatpush1.xpose.msra.mxu0 0.0
    %798 = vmatprep.subr.mxu0 0.0
    %799 = vmatpush1.xpose.msra.mxu0 0.0
    %800 = vmatprep.subr.mxu0 0.0
    %801 = vmatpush1.xpose.msra.mxu0 %v770
    %802 = vmatprep.subr.mxu0 0.0
    %803 = vmatpush1.xpose.msra.mxu0 %v768
    %804 = vmatprep.subr.mxu0 0.0
    %805 = vmatpush2.xpose.msra.mxu0 0.0
    %806 = vmatprep.subr.mxu0 0.0
    %807 = vmatpush2.xpose.msra.mxu0 0.0
    %808 = vmatprep.subr.mxu0 0.0
    %809 = vmatpush2.xpose.msra.mxu0 0.0
    %810 = vmatprep.subr.mxu0 0.0
    %811 = vmatpush2.xpose.msra.mxu0 0.0
    %812 = vmatprep.subr.mxu0 0.0
    %813 = vmatpush2.xpose.msra.mxu0 0.0
    %814 = vmatprep.subr.mxu0 0.0
    %815 = vmatpush2.xpose.msra.mxu0 0.0
    %816 = vmatprep.subr.mxu0 0.0
    %817 = vmatpush2.xpose.msra.mxu0 0.0
    %818 = vmatprep.subr.mxu0 0.0
    %819 = vmatpush2.xpose.msra.mxu0 0.0
    %820 = vmatprep.subr.mxu0 0.0
    %821 = vmatpush2.xpose.msra.mxu0 0.0
    %822 = vmatprep.subr.mxu0 0.0
    %823 = vmatpush2.xpose.msra.mxu0 0.0
    %824 = vmatprep.subr.mxu0 0.0
    %825 = vmatpush2.xpose.msra.mxu0 0.0
    %826 = vmatprep.subr.mxu0 0.0
    %827 = vmatpush2.xpose.msra.mxu0 0.0
    %828 = vmatprep.subr.mxu0 0.0
    %829 = vmatpush2.xpose.msra.mxu0 0.0
    %830 = vmatprep.subr.mxu0 0.0
    %831 = vmatpush2.xpose.msra.mxu0 0.0
    %832 = vmatprep.subr.mxu0 0.0
    %833 = vmatpush2.xpose.msra.mxu0 0.0
    %834 = vmatprep.subr.mxu0 0.0
    %835 = vmatpush2.xpose.msra.mxu0 0.0
    %836 = vmatprep.mubr.f32.mxu0 0.0
    %837 = vmatmul.mubr.f32.gmra.mxu0 %v764
    %v838 = vpop.f32.mrf.mxu0
    %v839 = vadd.f32 %v188, %v838
    %v840 = vpop.f32.mrf.mxu0
    %841 = vmatprep.mubr.f32.mxu0 0.0
    %842 = vmatmul.mubr.f32.gmra.mxu0 %v766
    %v843 = vpop.f32.mrf.mxu0
    %v844 = vadd.f32 %v189, %v843
    %v845 = vpop.f32.mrf.mxu0
    %846 = vdwg.mxu0
    %v847 = vsel %vm284, %v839, -inf
    %848 = vmax.xlane.f32.xlu0 %v847
    %v849 = vpop.xlane.xlu0 %848
    %v850 = vsel %vm284, %v844, -inf
    %851 = vmax.xlane.f32.xlu0 %v850
    %v852 = vpop.xlane.xlu0 %851
    %v853 = vsub.f32 %v839, %v849
    %v854 = vsub.f32 %v844, %v852
    %v855 = vmul.f32 %v853, 1.442695
    %v856 = vpow.pop %v855
    %v857 = vmul.f32 %v854, 1.442695
    %v858 = vpow.pop %v857
    %v859 = vsel %vm284, %v856, 0.0
    %860 = vadd.xlane.f32.xlu0 %v859
    %v861 = vpop.xlane.xlu0 %860
    %v862 = vsel %vm284, %v858, 0.0
    %863 = vadd.xlane.f32.xlu0 %v862
    %v864 = vpop.xlane.xlu0 %863
    %v865 = vrcp.pop %v861
    %v866 = vmul.f32 %v856, %v865
    %v867 = vrcp.pop %v864
    %v868 = vmul.f32 %v858, %v867
    %869 = vrot.lane.b32.xlu0 %v180, 48
    %v870 = vpop.permute.xlu0 %869
    %871 = vrot.lane.b32.xlu0 %v185, 48
    %v872 = vpop.permute.xlu0 %871
    %v876 = vsel %vm284, %v866, 0
    %v879 = vsel %vm284, %v868, 0
    %881 = vmatprep.subr.mxu0 0.0
    %882 = vmatpush1.msra.mxu0 0.0
    %883 = vmatprep.subr.mxu0 0.0
    %884 = vmatpush1.msra.mxu0 0.0
    %885 = vmatprep.subr.mxu0 0.0
    %886 = vmatpush1.msra.mxu0 0.0
    %887 = vmatprep.subr.mxu0 0.0
    %888 = vmatpush1.msra.mxu0 0.0
    %889 = vmatprep.subr.mxu0 0.0
    %890 = vmatpush1.msra.mxu0 0.0
    %891 = vmatprep.subr.mxu0 0.0
    %892 = vmatpush1.msra.mxu0 0.0
    %893 = vmatprep.subr.mxu0 0.0
    %894 = vmatpush1.msra.mxu0 0.0
    %895 = vmatprep.subr.mxu0 0.0
    %896 = vmatpush1.msra.mxu0 0.0
    %897 = vmatprep.subr.mxu0 0.0
    %898 = vmatpush1.msra.mxu0 0.0
    %899 = vmatprep.subr.mxu0 0.0
    %900 = vmatpush1.msra.mxu0 0.0
    %901 = vmatprep.subr.mxu0 0.0
    %902 = vmatpush1.msra.mxu0 0.0
    %903 = vmatprep.subr.mxu0 0.0
    %904 = vmatpush1.msra.mxu0 0.0
    %905 = vmatprep.subr.mxu0 0.0
    %906 = vmatpush1.msra.mxu0 0.0
    %907 = vmatprep.subr.mxu0 0.0
    %908 = vmatpush1.msra.mxu0 0.0
    %909 = vmatprep.subr.mxu0 0.0
    %910 = vmatpush1.msra.mxu0 %v872
    %911 = vmatprep.subr.mxu0 0.0
    %912 = vmatpush1.msra.mxu0 %v870
    %913 = vmatprep.subr.mxu0 0.0
    %914 = vmatpush2.msra.mxu0 0.0
    %915 = vmatprep.subr.mxu0 0.0
    %916 = vmatpush2.msra.mxu0 0.0
    %917 = vmatprep.subr.mxu0 0.0
    %918 = vmatpush2.msra.mxu0 0.0
    %919 = vmatprep.subr.mxu0 0.0
    %920 = vmatpush2.msra.mxu0 0.0
    %921 = vmatprep.subr.mxu0 0.0
    %922 = vmatpush2.msra.mxu0 0.0
    %923 = vmatprep.subr.mxu0 0.0
    %924 = vmatpush2.msra.mxu0 0.0
    %925 = vmatprep.subr.mxu0 0.0
    %926 = vmatpush2.msra.mxu0 0.0
    %927 = vmatprep.subr.mxu0 0.0
    %928 = vmatpush2.msra.mxu0 0.0
    %929 = vmatprep.subr.mxu0 0.0
    %930 = vmatpush2.msra.mxu0 0.0
    %931 = vmatprep.subr.mxu0 0.0
    %932 = vmatpush2.msra.mxu0 0.0
    %933 = vmatprep.subr.mxu0 0.0
    %934 = vmatpush2.msra.mxu0 0.0
    %935 = vmatprep.subr.mxu0 0.0
    %936 = vmatpush2.msra.mxu0 0.0
    %937 = vmatprep.subr.mxu0 0.0
    %938 = vmatpush2.msra.mxu0 0.0
    %939 = vmatprep.subr.mxu0 0.0
    %940 = vmatpush2.msra.mxu0 0.0
    %941 = vmatprep.subr.mxu0 0.0
    %942 = vmatpush2.msra.mxu0 0.0
    %943 = vmatprep.subr.mxu0 0.0
    %944 = vmatpush2.msra.mxu0 0.0
    %945 = vmatprep.mubr.f32.mxu0 0.0
    %946 = vmatmul.mubr.f32.gmra.mxu0 %v876
    %v947 = vpop.f32.mrf.mxu0
    %v948 = vadd.f32 0.0, %v947
    %v949 = vpop.f32.mrf.mxu0
    %950 = vmatprep.mubr.f32.mxu0 0.0
    %951 = vmatmul.mubr.f32.gmra.mxu0 %v879
    %v952 = vpop.f32.mrf.mxu0
    %v953 = vadd.f32 0.0, %v952
    %v954 = vpop.f32.mrf.mxu0
    %955 = vdwg.mxu0
    %v957 = vsel %vm200, %v948, 0
    %v960 = vsel %vm200, %v953, 0
    %962 = vmatprep.subr.mxu0 0.0
    %963 = vmatpush1.msra.mxu0 0.0
    %964 = vmatprep.subr.mxu0 0.0
    %965 = vmatpush1.msra.mxu0 0.0
    %966 = vmatprep.subr.mxu0 0.0
    %967 = vmatpush1.msra.mxu0 0.0
    %968 = vmatprep.subr.mxu0 0.0
    %969 = vmatpush1.msra.mxu0 0.0
    %970 = vmatprep.subr.mxu0 0.0
    %971 = vmatpush1.msra.mxu0 0.0
    %972 = vmatprep.subr.mxu0 0.0
    %973 = vmatpush1.msra.mxu0 0.0
    %974 = vmatprep.subr.mxu0 0.0
    %975 = vmatpush1.msra.mxu0 0.0
    %976 = vmatprep.subr.mxu0 0.0
    %977 = vmatpush1.msra.mxu0 0.0
    %978 = vmatprep.subr.mxu0 0.0
    %979 = vmatpush1.msra.mxu0 0.0
    %980 = vmatprep.subr.mxu0 0.0
    %981 = vmatpush1.msra.mxu0 0.0
    %982 = vmatprep.subr.mxu0 0.0
    %983 = vmatpush1.msra.mxu0 0.0
    %984 = vmatprep.subr.mxu0 0.0
    %985 = vmatpush1.msra.mxu0 0.0
    %986 = vmatprep.subr.mxu0 0.0
    %987 = vmatpush1.msra.mxu0 0.0
    %988 = vmatprep.subr.mxu0 0.0
    %989 = vmatpush1.msra.mxu0 0.0
    %990 = vmatprep.subr.mxu0 0.0
    %991 = vmatpush1.msra.mxu0 0.0
    %992 = vmatprep.subr.mxu0 0.0
    %993 = vmatpush1.msra.mxu0 %v192
    %994 = vmatprep.subr.mxu0 0.0
    %995 = vmatpush2.msra.mxu0 0.0
    %996 = vmatprep.subr.mxu0 0.0
    %997 = vmatpush2.msra.mxu0 0.0
    %998 = vmatprep.subr.mxu0 0.0
    %999 = vmatpush2.msra.mxu0 0.0
    %1000 = vmatprep.subr.mxu0 0.0
    %1001 = vmatpush2.msra.mxu0 0.0
    %1002 = vmatprep.subr.mxu0 0.0
    %1003 = vmatpush2.msra.mxu0 0.0
    %1004 = vmatprep.subr.mxu0 0.0
    %1005 = vmatpush2.msra.mxu0 0.0
    %1006 = vmatprep.subr.mxu0 0.0
    %1007 = vmatpush2.msra.mxu0 0.0
    %1008 = vmatprep.subr.mxu0 0.0
    %1009 = vmatpush2.msra.mxu0 0.0
    %1010 = vmatprep.subr.mxu0 0.0
    %1011 = vmatpush2.msra.mxu0 0.0
    %1012 = vmatprep.subr.mxu0 0.0
    %1013 = vmatpush2.msra.mxu0 0.0
    %1014 = vmatprep.subr.mxu0 0.0
    %1015 = vmatpush2.msra.mxu0 0.0
    %1016 = vmatprep.subr.mxu0 0.0
    %1017 = vmatpush2.msra.mxu0 0.0
    %1018 = vmatprep.subr.mxu0 0.0
    %1019 = vmatpush2.msra.mxu0 0.0
    %1020 = vmatprep.subr.mxu0 0.0
    %1021 = vmatpush2.msra.mxu0 0.0
    %1022 = vmatprep.subr.mxu0 0.0
    %1023 = vmatpush2.msra.mxu0 0.0
    %1024 = vmatprep.subr.mxu0 0.0
    %1025 = vmatpush2.msra.mxu0 0.0
    %1026 = vmatprep.mubr.f32.mxu0 0.0
    %1027 = vmatmul.mubr.f32.gmra.mxu0 %v957
    %v1028 = vpop.f32.mrf.mxu0
    %v1029 = vadd.f32 0.0, %v1028
    %v1030 = vpop.f32.mrf.mxu0
    %1031 = vmatprep.mubr.f32.mxu0 0.0
    %1032 = vmatmul.mubr.f32.gmra.mxu0 %v960
    %v1033 = vpop.f32.mrf.mxu0
    %v1034 = vadd.f32 0.0, %v1033
    %v1035 = vpop.f32.mrf.mxu0
    %1036 = vdwg.mxu0
    %v1037 = vadd.f32 %v748, %v1029
    %v1038 = vadd.f32 %v753, %v1034
    %1039 = vrot.lane.b32.xlu0 %v180, 104
    %v1040 = vpop.permute.xlu0 %1039
    %1041 = vrot.lane.b32.xlu0 %v185, 104
    %v1042 = vpop.permute.xlu0 %1041
    %1043 = vrot.lane.b32.xlu0 %v180, 72
    %v1044 = vpop.permute.xlu0 %1043
    %1045 = vrot.lane.b32.xlu0 %v185, 72
    %v1046 = vpop.permute.xlu0 %1045
    %v1047 = vsel %vm200, %v1040, 0
    %v1049 = vsel %vm200, %v1042, 0
    %v1051 = vsel %vm200, %v1044, 0
    %v1053 = vsel %vm200, %v1046, 0
    %1055 = vmatprep.subr.mxu0 0.0
    %1056 = vmatpush1.xpose.msra.mxu0 0.0
    %1057 = vmatprep.subr.mxu0 0.0
    %1058 = vmatpush1.xpose.msra.mxu0 0.0
    %1059 = vmatprep.subr.mxu0 0.0
    %1060 = vmatpush1.xpose.msra.mxu0 0.0
    %1061 = vmatprep.subr.mxu0 0.0
    %1062 = vmatpush1.xpose.msra.mxu0 0.0
    %1063 = vmatprep.subr.mxu0 0.0
    %1064 = vmatpush1.xpose.msra.mxu0 0.0
    %1065 = vmatprep.subr.mxu0 0.0
    %1066 = vmatpush1.xpose.msra.mxu0 0.0
    %1067 = vmatprep.subr.mxu0 0.0
    %1068 = vmatpush1.xpose.msra.mxu0 0.0
    %1069 = vmatprep.subr.mxu0 0.0
    %1070 = vmatpush1.xpose.msra.mxu0 0.0
    %1071 = vmatprep.subr.mxu0 0.0
    %1072 = vmatpush1.xpose.msra.mxu0 0.0
    %1073 = vmatprep.subr.mxu0 0.0
    %1074 = vmatpush1.xpose.msra.mxu0 0.0
    %1075 = vmatprep.subr.mxu0 0.0
    %1076 = vmatpush1.xpose.msra.mxu0 0.0
    %1077 = vmatprep.subr.mxu0 0.0
    %1078 = vmatpush1.xpose.msra.mxu0 0.0
    %1079 = vmatprep.subr.mxu0 0.0
    %1080 = vmatpush1.xpose.msra.mxu0 0.0
    %1081 = vmatprep.subr.mxu0 0.0
    %1082 = vmatpush1.xpose.msra.mxu0 0.0
    %1083 = vmatprep.subr.mxu0 0.0
    %1084 = vmatpush1.xpose.msra.mxu0 %v1053
    %1085 = vmatprep.subr.mxu0 0.0
    %1086 = vmatpush1.xpose.msra.mxu0 %v1051
    %1087 = vmatprep.subr.mxu0 0.0
    %1088 = vmatpush2.xpose.msra.mxu0 0.0
    %1089 = vmatprep.subr.mxu0 0.0
    %1090 = vmatpush2.xpose.msra.mxu0 0.0
    %1091 = vmatprep.subr.mxu0 0.0
    %1092 = vmatpush2.xpose.msra.mxu0 0.0
    %1093 = vmatprep.subr.mxu0 0.0
    %1094 = vmatpush2.xpose.msra.mxu0 0.0
    %1095 = vmatprep.subr.mxu0 0.0
    %1096 = vmatpush2.xpose.msra.mxu0 0.0
    %1097 = vmatprep.subr.mxu0 0.0
    %1098 = vmatpush2.xpose.msra.mxu0 0.0
    %1099 = vmatprep.subr.mxu0 0.0
    %1100 = vmatpush2.xpose.msra.mxu0 0.0
    %1101 = vmatprep.subr.mxu0 0.0
    %1102 = vmatpush2.xpose.msra.mxu0 0.0
    %1103 = vmatprep.subr.mxu0 0.0
    %1104 = vmatpush2.xpose.msra.mxu0 0.0
    %1105 = vmatprep.subr.mxu0 0.0
    %1106 = vmatpush2.xpose.msra.mxu0 0.0
    %1107 = vmatprep.subr.mxu0 0.0
    %1108 = vmatpush2.xpose.msra.mxu0 0.0
    %1109 = vmatprep.subr.mxu0 0.0
    %1110 = vmatpush2.xpose.msra.mxu0 0.0
    %1111 = vmatprep.subr.mxu0 0.0
    %1112 = vmatpush2.xpose.msra.mxu0 0.0
    %1113 = vmatprep.subr.mxu0 0.0
    %1114 = vmatpush2.xpose.msra.mxu0 0.0
    %1115 = vmatprep.subr.mxu0 0.0
    %1116 = vmatpush2.xpose.msra.mxu0 0.0
    %1117 = vmatprep.subr.mxu0 0.0
    %1118 = vmatpush2.xpose.msra.mxu0 0.0
    %1119 = vmatprep.mubr.f32.mxu0 0.0
    %1120 = vmatmul.mubr.f32.gmra.mxu0 %v1047
    %v1121 = vpop.f32.mrf.mxu0
    %v1122 = vadd.f32 %v188, %v1121
    %v1123 = vpop.f32.mrf.mxu0
    %1124 = vmatprep.mubr.f32.mxu0 0.0
    %1125 = vmatmul.mubr.f32.gmra.mxu0 %v1049
    %v1126 = vpop.f32.mrf.mxu0
    %v1127 = vadd.f32 %v189, %v1126
    %v1128 = vpop.f32.mrf.mxu0
    %1129 = vdwg.mxu0
    %v1130 = vsel %vm284, %v1122, -inf
    %1131 = vmax.xlane.f32.xlu0 %v1130
    %v1132 = vpop.xlane.xlu0 %1131
    %v1133 = vsel %vm284, %v1127, -inf
    %1134 = vmax.xlane.f32.xlu0 %v1133
    %v1135 = vpop.xlane.xlu0 %1134
    %v1136 = vsub.f32 %v1122, %v1132
    %v1137 = vsub.f32 %v1127, %v1135
    %v1138 = vmul.f32 %v1136, 1.442695
    %v1139 = vpow.pop %v1138
    %v1140 = vmul.f32 %v1137, 1.442695
    %v1141 = vpow.pop %v1140
    %v1142 = vsel %vm284, %v1139, 0.0
    %1143 = vadd.xlane.f32.xlu0 %v1142
    %v1144 = vpop.xlane.xlu0 %1143
    %v1145 = vsel %vm284, %v1141, 0.0
    %1146 = vadd.xlane.f32.xlu0 %v1145
    %v1147 = vpop.xlane.xlu0 %1146
    %v1148 = vrcp.pop %v1144
    %v1149 = vmul.f32 %v1139, %v1148
    %v1150 = vrcp.pop %v1147
    %v1151 = vmul.f32 %v1141, %v1150
    %1152 = vrot.lane.b32.xlu0 %v180, 40
    %v1153 = vpop.permute.xlu0 %1152
    %1154 = vrot.lane.b32.xlu0 %v185, 40
    %v1155 = vpop.permute.xlu0 %1154
    %v1159 = vsel %vm284, %v1149, 0
    %v1162 = vsel %vm284, %v1151, 0
    %1164 = vmatprep.subr.mxu0 0.0
    %1165 = vmatpush1.msra.mxu0 0.0
    %1166 = vmatprep.subr.mxu0 0.0
    %1167 = vmatpush1.msra.mxu0 0.0
    %1168 = vmatprep.subr.mxu0 0.0
    %1169 = vmatpush1.msra.mxu0 0.0
    %1170 = vmatprep.subr.mxu0 0.0
    %1171 = vmatpush1.msra.mxu0 0.0
    %1172 = vmatprep.subr.mxu0 0.0
    %1173 = vmatpush1.msra.mxu0 0.0
    %1174 = vmatprep.subr.mxu0 0.0
    %1175 = vmatpush1.msra.mxu0 0.0
    %1176 = vmatprep.subr.mxu0 0.0
    %1177 = vmatpush1.msra.mxu0 0.0
    %1178 = vmatprep.subr.mxu0 0.0
    %1179 = vmatpush1.msra.mxu0 0.0
    %1180 = vmatprep.subr.mxu0 0.0
    %1181 = vmatpush1.msra.mxu0 0.0
    %1182 = vmatprep.subr.mxu0 0.0
    %1183 = vmatpush1.msra.mxu0 0.0
    %1184 = vmatprep.subr.mxu0 0.0
    %1185 = vmatpush1.msra.mxu0 0.0
    %1186 = vmatprep.subr.mxu0 0.0
    %1187 = vmatpush1.msra.mxu0 0.0
    %1188 = vmatprep.subr.mxu0 0.0
    %1189 = vmatpush1.msra.mxu0 0.0
    %1190 = vmatprep.subr.mxu0 0.0
    %1191 = vmatpush1.msra.mxu0 0.0
    %1192 = vmatprep.subr.mxu0 0.0
    %1193 = vmatpush1.msra.mxu0 %v1155
    %1194 = vmatprep.subr.mxu0 0.0
    %1195 = vmatpush1.msra.mxu0 %v1153
    %1196 = vmatprep.subr.mxu0 0.0
    %1197 = vmatpush2.msra.mxu0 0.0
    %1198 = vmatprep.subr.mxu0 0.0
    %1199 = vmatpush2.msra.mxu0 0.0
    %1200 = vmatprep.subr.mxu0 0.0
    %1201 = vmatpush2.msra.mxu0 0.0
    %1202 = vmatprep.subr.mxu0 0.0
    %1203 = vmatpush2.msra.mxu0 0.0
    %1204 = vmatprep.subr.mxu0 0.0
    %1205 = vmatpush2.msra.mxu0 0.0
    %1206 = vmatprep.subr.mxu0 0.0
    %1207 = vmatpush2.msra.mxu0 0.0
    %1208 = vmatprep.subr.mxu0 0.0
    %1209 = vmatpush2.msra.mxu0 0.0
    %1210 = vmatprep.subr.mxu0 0.0
    %1211 = vmatpush2.msra.mxu0 0.0
    %1212 = vmatprep.subr.mxu0 0.0
    %1213 = vmatpush2.msra.mxu0 0.0
    %1214 = vmatprep.subr.mxu0 0.0
    %1215 = vmatpush2.msra.mxu0 0.0
    %1216 = vmatprep.subr.mxu0 0.0
    %1217 = vmatpush2.msra.mxu0 0.0
    %1218 = vmatprep.subr.mxu0 0.0
    %1219 = vmatpush2.msra.mxu0 0.0
    %1220 = vmatprep.subr.mxu0 0.0
    %1221 = vmatpush2.msra.mxu0 0.0
    %1222 = vmatprep.subr.mxu0 0.0
    %1223 = vmatpush2.msra.mxu0 0.0
    %1224 = vmatprep.subr.mxu0 0.0
    %1225 = vmatpush2.msra.mxu0 0.0
    %1226 = vmatprep.subr.mxu0 0.0
    %1227 = vmatpush2.msra.mxu0 0.0
    %1228 = vmatprep.mubr.f32.mxu0 0.0
    %1229 = vmatmul.mubr.f32.gmra.mxu0 %v1159
    %v1230 = vpop.f32.mrf.mxu0
    %v1231 = vadd.f32 0.0, %v1230
    %v1232 = vpop.f32.mrf.mxu0
    %1233 = vmatprep.mubr.f32.mxu0 0.0
    %1234 = vmatmul.mubr.f32.gmra.mxu0 %v1162
    %v1235 = vpop.f32.mrf.mxu0
    %v1236 = vadd.f32 0.0, %v1235
    %v1237 = vpop.f32.mrf.mxu0
    %1238 = vdwg.mxu0
    %v1240 = vsel %vm200, %v1231, 0
    %v1243 = vsel %vm200, %v1236, 0
    %1245 = vmatprep.subr.mxu0 0.0
    %1246 = vmatpush1.msra.mxu0 0.0
    %1247 = vmatprep.subr.mxu0 0.0
    %1248 = vmatpush1.msra.mxu0 0.0
    %1249 = vmatprep.subr.mxu0 0.0
    %1250 = vmatpush1.msra.mxu0 0.0
    %1251 = vmatprep.subr.mxu0 0.0
    %1252 = vmatpush1.msra.mxu0 0.0
    %1253 = vmatprep.subr.mxu0 0.0
    %1254 = vmatpush1.msra.mxu0 0.0
    %1255 = vmatprep.subr.mxu0 0.0
    %1256 = vmatpush1.msra.mxu0 0.0
    %1257 = vmatprep.subr.mxu0 0.0
    %1258 = vmatpush1.msra.mxu0 0.0
    %1259 = vmatprep.subr.mxu0 0.0
    %1260 = vmatpush1.msra.mxu0 0.0
    %1261 = vmatprep.subr.mxu0 0.0
    %1262 = vmatpush1.msra.mxu0 0.0
    %1263 = vmatprep.subr.mxu0 0.0
    %1264 = vmatpush1.msra.mxu0 0.0
    %1265 = vmatprep.subr.mxu0 0.0
    %1266 = vmatpush1.msra.mxu0 0.0
    %1267 = vmatprep.subr.mxu0 0.0
    %1268 = vmatpush1.msra.mxu0 0.0
    %1269 = vmatprep.subr.mxu0 0.0
    %1270 = vmatpush1.msra.mxu0 0.0
    %1271 = vmatprep.subr.mxu0 0.0
    %1272 = vmatpush1.msra.mxu0 0.0
    %1273 = vmatprep.subr.mxu0 0.0
    %1274 = vmatpush1.msra.mxu0 0.0
    %1275 = vmatprep.subr.mxu0 0.0
    %1276 = vmatpush1.msra.mxu0 %v193
    %1277 = vmatprep.subr.mxu0 0.0
    %1278 = vmatpush2.msra.mxu0 0.0
    %1279 = vmatprep.subr.mxu0 0.0
    %1280 = vmatpush2.msra.mxu0 0.0
    %1281 = vmatprep.subr.mxu0 0.0
    %1282 = vmatpush2.msra.mxu0 0.0
    %1283 = vmatprep.subr.mxu0 0.0
    %1284 = vmatpush2.msra.mxu0 0.0
    %1285 = vmatprep.subr.mxu0 0.0
    %1286 = vmatpush2.msra.mxu0 0.0
    %1287 = vmatprep.subr.mxu0 0.0
    %1288 = vmatpush2.msra.mxu0 0.0
    %1289 = vmatprep.subr.mxu0 0.0
    %1290 = vmatpush2.msra.mxu0 0.0
    %1291 = vmatprep.subr.mxu0 0.0
    %1292 = vmatpush2.msra.mxu0 0.0
    %1293 = vmatprep.subr.mxu0 0.0
    %1294 = vmatpush2.msra.mxu0 0.0
    %1295 = vmatprep.subr.mxu0 0.0
    %1296 = vmatpush2.msra.mxu0 0.0
    %1297 = vmatprep.subr.mxu0 0.0
    %1298 = vmatpush2.msra.mxu0 0.0
    %1299 = vmatprep.subr.mxu0 0.0
    %1300 = vmatpush2.msra.mxu0 0.0
    %1301 = vmatprep.subr.mxu0 0.0
    %1302 = vmatpush2.msra.mxu0 0.0
    %1303 = vmatprep.subr.mxu0 0.0
    %1304 = vmatpush2.msra.mxu0 0.0
    %1305 = vmatprep.subr.mxu0 0.0
    %1306 = vmatpush2.msra.mxu0 0.0
    %1307 = vmatprep.subr.mxu0 0.0
    %1308 = vmatpush2.msra.mxu0 0.0
    %1309 = vmatprep.mubr.f32.mxu0 0.0
    %1310 = vmatmul.mubr.f32.gmra.mxu0 %v1240
    %v1311 = vpop.f32.mrf.mxu0
    %v1312 = vadd.f32 0.0, %v1311
    %v1313 = vpop.f32.mrf.mxu0
    %1314 = vmatprep.mubr.f32.mxu0 0.0
    %1315 = vmatmul.mubr.f32.gmra.mxu0 %v1243
    %v1316 = vpop.f32.mrf.mxu0
    %v1317 = vadd.f32 0.0, %v1316
    %v1318 = vpop.f32.mrf.mxu0
    %1319 = vdwg.mxu0
    %v1320 = vadd.f32 %v1037, %v1312
    %v1321 = vadd.f32 %v1038, %v1317
    %v1322 = vadd.f32 %v48, %v1320
    %v1323 = vadd.f32 %v49, %v1321
    %v1324 = vld [vmem:[%s7] sm:$0x1]
    %v1326 = vlaneseq
    %v1327 = vshrl.u32 %v1326, 7
    %v1328 = vsub.s32 0, %v1327
    %v1329 = vrot.slane %v1324, %v1328
    %v1331 = vadd.f32 %v1322, %v1329
    %v1332 = vadd.f32 %v1323, %v1329
    %v1333 = vld [vmem:[%s8] sm:$0x1]
    %v1334 = vld [vmem:[%s9] sm:$0x1]
    %v1335 = vsel %vm52, %v1331, 0.0
    %1336 = vadd.xlane.f32.xlu0 %v1335
    %v1337 = vpop.xlane.xlu0 %1336
    %v1338 = vsel %vm52, %v1332, 0.0
    %1339 = vadd.xlane.f32.xlu0 %v1338
    %v1340 = vpop.xlane.xlu0 %1339
    %v1341 = vmul.f32 %v1337, %v59
    %v1342 = vmul.f32 %v1340, %v59
    %v1343 = vsub.f32 %v1331, %v1341
    %v1344 = vsub.f32 %v1332, %v1342
    %v1345 = vmul.f32 %v1343, %v1343
    %v1346 = vmul.f32 %v1344, %v1344
    %v1347 = vsel %vm52, %v1345, 0.0
    %1348 = vadd.xlane.f32.xlu0 %v1347
    %v1349 = vpop.xlane.xlu0 %1348
    %v1350 = vsel %vm52, %v1346, 0.0
    %1351 = vadd.xlane.f32.xlu0 %v1350
    %v1352 = vpop.xlane.xlu0 %1351
    %v1353 = vmul.f32 %v1349, %v59
    %v1354 = vmul.f32 %v1352, %v59
    %v1355 = vadd.f32 %v1353, 1e-05
    %v1356 = vadd.f32 %v1354, 1e-05
    %v1357 = vrsqrt.pop %v1355
    %v1358 = vrsqrt.pop %v1356
    %v1359 = vmul.f32 %v1343, %v1357
    %v1360 = vmul.f32 %v1344, %v1358
    %v1362 = vlaneseq
    %v1363 = vshrl.u32 %v1362, 7
    %v1364 = vsub.s32 0, %v1363
    %v1365 = vrot.slane %v1333, %v1364
    %v1367 = vmul.f32 %v1359, %v1365
    %v1368 = vmul.f32 %v1360, %v1365
    %v1370 = vlaneseq
    %v1371 = vshrl.u32 %v1370, 7
    %v1372 = vsub.s32 0, %v1371
    %v1373 = vrot.slane %v1334, %v1372
    %v1375 = vadd.f32 %v1367, %v1373
    %v1376 = vadd.f32 %v1368, %v1373
    %v1377 = vld [vmem:[%s10] sm:$0xff]
    %v1378 = vld [vmem:[%s10 + $0x8] sm:$0xff]
    %v1379 = vld [vmem:[%s10 + $0x10] sm:$0xff]
    %v1380 = vld [vmem:[%s10 + $0x18] sm:$0xff]
    %v1381 = vld [vmem:[%s11] sm:$0x1]
    %v1383 = vlaneseq
    %v1384 = vshrl.u32 %v1383, 7
    %v1385 = vsub.s32 0, %v1384
    %v1386 = vrot.slane %v1381, %v1385
    %v1389 = vsel %vm52, %v1375, 0
    %v1392 = vsel %vm52, %v1376, 0
    %1394 = vmatprep.subr.mxu0 0.0
    %1395 = vmatpush1.msra.mxu0 0.0
    %1396 = vmatprep.subr.mxu0 0.0
    %1397 = vmatpush1.msra.mxu0 0.0
    %1398 = vmatprep.subr.mxu0 0.0
    %1399 = vmatpush1.msra.mxu0 0.0
    %1400 = vmatprep.subr.mxu0 0.0
    %1401 = vmatpush1.msra.mxu0 0.0
    %1402 = vmatprep.subr.mxu0 0.0
    %1403 = vmatpush1.msra.mxu0 0.0
    %1404 = vmatprep.subr.mxu0 0.0
    %1405 = vmatpush1.msra.mxu0 0.0
    %1406 = vmatprep.subr.mxu0 0.0
    %1407 = vmatpush1.msra.mxu0 0.0
    %1408 = vmatprep.subr.mxu0 0.0
    %1409 = vmatpush1.msra.mxu0 0.0
    %1410 = vmatprep.subr.mxu0 0.0
    %1411 = vmatpush1.msra.mxu0 0.0
    %1412 = vmatprep.subr.mxu0 0.0
    %1413 = vmatpush1.msra.mxu0 0.0
    %1414 = vmatprep.subr.mxu0 0.0
    %1415 = vmatpush1.msra.mxu0 0.0
    %1416 = vmatprep.subr.mxu0 0.0
    %1417 = vmatpush1.msra.mxu0 0.0
    %1418 = vmatprep.subr.mxu0 0.0
    %1419 = vmatpush1.msra.mxu0 %v1380
    %1420 = vmatprep.subr.mxu0 0.0
    %1421 = vmatpush1.msra.mxu0 %v1379
    %1422 = vmatprep.subr.mxu0 0.0
    %1423 = vmatpush1.msra.mxu0 %v1378
    %1424 = vmatprep.subr.mxu0 0.0
    %1425 = vmatpush1.msra.mxu0 %v1377
    %1426 = vmatprep.subr.mxu0 0.0
    %1427 = vmatpush2.msra.mxu0 0.0
    %1428 = vmatprep.subr.mxu0 0.0
    %1429 = vmatpush2.msra.mxu0 0.0
    %1430 = vmatprep.subr.mxu0 0.0
    %1431 = vmatpush2.msra.mxu0 0.0
    %1432 = vmatprep.subr.mxu0 0.0
    %1433 = vmatpush2.msra.mxu0 0.0
    %1434 = vmatprep.subr.mxu0 0.0
    %1435 = vmatpush2.msra.mxu0 0.0
    %1436 = vmatprep.subr.mxu0 0.0
    %1437 = vmatpush2.msra.mxu0 0.0
    %1438 = vmatprep.subr.mxu0 0.0
    %1439 = vmatpush2.msra.mxu0 0.0
    %1440 = vmatprep.subr.mxu0 0.0
    %1441 = vmatpush2.msra.mxu0 0.0
    %1442 = vmatprep.subr.mxu0 0.0
    %1443 = vmatpush2.msra.mxu0 0.0
    %1444 = vmatprep.subr.mxu0 0.0
    %1445 = vmatpush2.msra.mxu0 0.0
    %1446 = vmatprep.subr.mxu0 0.0
    %1447 = vmatpush2.msra.mxu0 0.0
    %1448 = vmatprep.subr.mxu0 0.0
    %1449 = vmatpush2.msra.mxu0 0.0
    %1450 = vmatprep.subr.mxu0 0.0
    %1451 = vmatpush2.msra.mxu0 0.0
    %1452 = vmatprep.subr.mxu0 0.0
    %1453 = vmatpush2.msra.mxu0 0.0
    %1454 = vmatprep.subr.mxu0 0.0
    %1455 = vmatpush2.msra.mxu0 0.0
    %1456 = vmatprep.subr.mxu0 0.0
    %1457 = vmatpush2.msra.mxu0 0.0
    %1458 = vmatprep.mubr.f32.mxu0 0.0
    %1459 = vmatmul.mubr.f32.gmra.mxu0 %v1389
    %v1460 = vpop.f32.mrf.mxu0
    %v1461 = vadd.f32 %v1386, %v1460
    %v1462 = vpop.f32.mrf.mxu0
    %1463 = vmatprep.mubr.f32.mxu0 0.0
    %1464 = vmatmul.mubr.f32.gmra.mxu0 %v1392
    %v1465 = vpop.f32.mrf.mxu0
    %v1466 = vadd.f32 %v1386, %v1465
    %v1467 = vpop.f32.mrf.mxu0
    %1468 = vdwg.mxu0
    %v1469 = vmul.f32 %v1461, 0.5
    %v1470 = vmul.f32 %v1466, 0.5
    %v1471 = vmul.f32 %v1461, 0.70710677
    %v1472 = vmul.f32 %v1466, 0.70710677
    %v1473 = vand.u32 2147483647, %v1471
    %v1474 = vand.u32 2147483647, %v1472
    %v1475 = vmul.f32 %v1473, 0.3275911
    %v1476 = vmul.f32 %v1474, 0.3275911
    %v1477 = vadd.f32 %v1475, 1.0
    %v1478 = vadd.f32 %v1476, 1.0
    %v1479 = vrcp.pop %v1477
    %v1480 = vmul.f32 1.0, %v1479
    %v1481 = vrcp.pop %v1478
    %v1482 = vmul.f32 1.0, %v1481
    %v1483 = vmul.f32 %v1480, 1.0614054
    %v1484 = vmul.f32 %v1482, 1.0614054
    %v1485 = vadd.f32 %v1483, -1.4531521
    %v1486 = vadd.f32 %v1484, -1.4531521
    %v1487 = vmul.f32 %v1485, %v1480
    %v1488 = vmul.f32 %v1486, %v1482
    %v1489 = vadd.f32 %v1487, 1.4214138
    %v1490 = vadd.f32 %v1488, 1.4214138
    %v1491 = vmul.f32 %v1489, %v1480
    %v1492 = vmul.f32 %v1490, %v1482
    %v1493 = vadd.f32 %v1491, -0.28449672
    %v1494 = vadd.f32 %v1492, -0.28449672
    %v1495 = vmul.f32 %v1493, %v1480
    %v1496 = vmul.f32 %v1494, %v1482
    %v1497 = vadd.f32 %v1495, 0.2548296
    %v1498 = vadd.f32 %v1496, 0.2548296
    %v1499 = vmul.f32 %v1497, %v1480
    %v1500 = vmul.f32 %v1498, %v1482
    %v1501 = vmul.f32 %v1473, %v1473
    %v1502 = vmul.f32 %v1474, %v1474
    %v1503 = vsub.f32 0.0, %v1501
    %v1504 = vsub.f32 0.0, %v1502
    %v1505 = vmul.f32 %v1503, 1.442695
    %v1506 = vpow.pop %v1505
    %v1507 = vmul.f32 %v1504, 1.442695
    %v1508 = vpow.pop %v1507
    %v1509 = vmul.f32 %v1499, %v1506
    %v1510 = vmul.f32 %v1500, %v1508
    %v1511 = vsub.f32 1.0, %v1509
    %v1512 = vsub.f32 1.0, %v1510
    %vm1513 = vcmp.ge.f32.partialorder %v1471, 0.0
    %vm1514 = vcmp.ge.f32.partialorder %v1472, 0.0
    %v1515 = vsub.f32 0.0, %v1511
    %v1516 = vsub.f32 0.0, %v1512
    %v1517 = vsel %vm1513, %v1511, %v1515
    %v1518 = vsel %vm1514, %v1512, %v1516
    %v1519 = vadd.f32 %v1517, 1.0
    %v1520 = vadd.f32 %v1518, 1.0
    %v1521 = vmul.f32 %v1469, %v1519
    %v1522 = vmul.f32 %v1470, %v1520
    %v1523 = vld [vmem:[%s12] sm:$0xff]
    %v1524 = vld [vmem:[%s12 + $0x8] sm:$0xff]
    %v1525 = vld [vmem:[%s12 + $0x10] sm:$0xff]
    %v1526 = vld [vmem:[%s12 + $0x18] sm:$0xff]
    %v1527 = vld [vmem:[%s12 + $0x20] sm:$0xff]
    %v1528 = vld [vmem:[%s12 + $0x28] sm:$0xff]
    %v1529 = vld [vmem:[%s12 + $0x30] sm:$0xff]
    %v1530 = vld [vmem:[%s12 + $0x38] sm:$0xff]
    %v1531 = vld [vmem:[%s12 + $0x40] sm:$0xff]
    %v1532 = vld [vmem:[%s12 + $0x48] sm:$0xff]
    %v1533 = vld [vmem:[%s12 + $0x50] sm:$0xff]
    %v1534 = vld [vmem:[%s12 + $0x58] sm:$0xff]
    %v1535 = vld [vmem:[%s12 + $0x60] sm:$0xff]
    %v1536 = vld [vmem:[%s12 + $0x68] sm:$0xff]
    %v1537 = vld [vmem:[%s12 + $0x70] sm:$0xff]
    %v1538 = vld [vmem:[%s12 + $0x78] sm:$0xff]
    %1539 = vmatprep.subr.mxu0 0.0
    %1540 = vmatpush1.msra.mxu0 %v1538
    %1541 = vmatprep.subr.mxu0 0.0
    %1542 = vmatpush1.msra.mxu0 %v1537
    %1543 = vmatprep.subr.mxu0 0.0
    %1544 = vmatpush1.msra.mxu0 %v1536
    %1545 = vmatprep.subr.mxu0 0.0
    %1546 = vmatpush1.msra.mxu0 %v1535
    %1547 = vmatprep.subr.mxu0 0.0
    %1548 = vmatpush1.msra.mxu0 %v1534
    %1549 = vmatprep.subr.mxu0 0.0
    %1550 = vmatpush1.msra.mxu0 %v1533
    %1551 = vmatprep.subr.mxu0 0.0
    %1552 = vmatpush1.msra.mxu0 %v1532
    %1553 = vmatprep.subr.mxu0 0.0
    %1554 = vmatpush1.msra.mxu0 %v1531
    %1555 = vmatprep.subr.mxu0 0.0
    %1556 = vmatpush1.msra.mxu0 %v1530
    %1557 = vmatprep.subr.mxu0 0.0
    %1558 = vmatpush1.msra.mxu0 %v1529
    %1559 = vmatprep.subr.mxu0 0.0
    %1560 = vmatpush1.msra.mxu0 %v1528
    %1561 = vmatprep.subr.mxu0 0.0
    %1562 = vmatpush1.msra.mxu0 %v1527
    %1563 = vmatprep.subr.mxu0 0.0
    %1564 = vmatpush1.msra.mxu0 %v1526
    %1565 = vmatprep.subr.mxu0 0.0
    %1566 = vmatpush1.msra.mxu0 %v1525
    %1567 = vmatprep.subr.mxu0 0.0
    %1568 = vmatpush1.msra.mxu0 %v1524
    %1569 = vmatprep.subr.mxu0 0.0
    %1570 = vmatpush1.msra.mxu0 %v1523
    %1571 = vmatprep.subr.mxu0 0.0
    %1572 = vmatpush2.msra.mxu0 0.0
    %1573 = vmatprep.subr.mxu0 0.0
    %1574 = vmatpush2.msra.mxu0 0.0
    %1575 = vmatprep.subr.mxu0 0.0
    %1576 = vmatpush2.msra.mxu0 0.0
    %1577 = vmatprep.subr.mxu0 0.0
    %1578 = vmatpush2.msra.mxu0 0.0
    %1579 = vmatprep.subr.mxu0 0.0
    %1580 = vmatpush2.msra.mxu0 0.0
    %1581 = vmatprep.subr.mxu0 0.0
    %1582 = vmatpush2.msra.mxu0 0.0
    %1583 = vmatprep.subr.mxu0 0.0
    %1584 = vmatpush2.msra.mxu0 0.0
    %1585 = vmatprep.subr.mxu0 0.0
    %1586 = vmatpush2.msra.mxu0 0.0
    %1587 = vmatprep.subr.mxu0 0.0
    %1588 = vmatpush2.msra.mxu0 0.0
    %1589 = vmatprep.subr.mxu0 0.0
    %1590 = vmatpush2.msra.mxu0 0.0
    %1591 = vmatprep.subr.mxu0 0.0
    %1592 = vmatpush2.msra.mxu0 0.0
    %1593 = vmatprep.subr.mxu0 0.0
    %1594 = vmatpush2.msra.mxu0 0.0
    %1595 = vmatprep.subr.mxu0 0.0
    %1596 = vmatpush2.msra.mxu0 0.0
    %1597 = vmatprep.subr.mxu0 0.0
    %1598 = vmatpush2.msra.mxu0 0.0
    %1599 = vmatprep.subr.mxu0 0.0
    %1600 = vmatpush2.msra.mxu0 0.0
    %1601 = vmatprep.subr.mxu0 0.0
    %1602 = vmatpush2.msra.mxu0 0.0
    %1603 = vmatprep.mubr.f32.mxu0 0.0
    %1604 = vmatmul.mubr.f32.gmra.mxu0 %v1521
    %v1605 = vpop.f32.mrf.mxu0
    %v1606 = vadd.f32 0.0, %v1605
    %v1607 = vpop.f32.mrf.mxu0
    %1608 = vmatprep.mubr.f32.mxu0 0.0
    %1609 = vmatmul.mubr.f32.gmra.mxu0 %v1522
    %v1610 = vpop.f32.mrf.mxu0
    %v1611 = vadd.f32 0.0, %v1610
    %v1612 = vpop.f32.mrf.mxu0
    %1613 = vdwg.mxu0
    %v1614 = vadd.f32 %v1331, %v1606
    %v1615 = vadd.f32 %v1332, %v1611
    %v1616 = vld [vmem:[%s13] sm:$0x1]
    %v1618 = vlaneseq
    %v1619 = vshrl.u32 %v1618, 7
    %v1620 = vsub.s32 0, %v1619
    %v1621 = vrot.slane %v1616, %v1620
    %v1623 = vadd.f32 %v1614, %v1621
    %v1624 = vadd.f32 %v1615, %v1621
    %1625 = vst.msk [vmem:[#allocation2] sm:$0xff] %vm52, %v1623
    %1626 = vst.msk [vmem:[#allocation2 + $0x8] sm:$0xff] %vm52, %v1624
    // Predicated region
    $region58: #{_custom_block_impl.1} parent=1 // pred_check
      _
    $region59: #{_custom_block_impl.1} parent=1 // pred_check_branch
      %1628 = sbr.rel (0) target = $region61
    $region60: #{_custom_block_impl.1} parent=1 // pred_region
      %s1630 = ssub.s32 256, 256
      %1631 = vsyncadd [#allocation3], %s1630
      %s1632 = sshll.u32 [#allocation2], 4
      %s1633 = int_to_ptr.vmem [resolvable:$true] %s1632
      %1638 = dma.vmem_to_hbm [thread:$0]  %s1633, 256, %s14, [#allocation3], 128, 128, 8
    $region61: #{_custom_block_impl.1} parent=1 // pred_fallthru
      _
    // Predicated region
    $region62: #{_custom_block_impl.1} parent=1 // pred_check
      _
    $region63: #{_custom_block_impl.1} parent=1 // pred_check_branch
      %1640 = sbr.rel (0) target = $region65
    $region64: #{_custom_block_impl.1} parent=1 // pred_region
      %1641 = dma.done [#allocation3], 256
    $region65: #{_custom_block_impl.1} parent=1 // pred_fallthru
      _
    %1642 = vsyncpa [#allocation3], 1

</llo_original>
